<compile_context>
chip_gen: v7x
topology: tpu7x:2x2x1
jax: 0.10.0
libtpu: 0.0.40
codegen_flags: <defaults>
</compile_context>

<pallas_src>
import jax
import jax.numpy as jnp
from jax.experimental import pallas as pl
from jax.experimental.pallas import tpu as pltpu


_PAD = 8  # sublane-aligned top halo for the in-kernel padded slabs


def _decoder_kernel(xup_ref, skip_ref, a1_ref, b1_ref, a2x_ref, a2s_ref,
                    b2_ref, o_ref, xup_slab, y1_slab, skip_slab):
    """Fused DecoderBlock forward for one image (grid axis = batch).

    xup_ref : (1, H, Wx*Cin)    x repeated 2x along H, lane-flattened
    skip_ref: (1, H, W*Cs)      skip, lane-flattened
    a1_ref  : (3, Wx*Cin, W*Cm) banded conv1 weights (W-upsample + W-pad folded in)
    a2x_ref : (3, W*Cm, W*Co)   banded conv2 weights, x-branch channels
    a2s_ref : (3, W*Cs, W*Co)   banded conv2 weights, skip-branch channels
    b1/b2   : (1, W*Cm)/(1, W*Co) biases tiled along W (lane layout w*C + c)
    o_ref   : (1, H, W*Co)      lane-dense output block
    *_slab  : (H + 2*_PAD, L)   f32 VMEM scratch with zero halo rows
    """
    H = o_ref.shape[1]

    def band_conv(slab, a_ref):
        # tap dh reads conv-input row (h + dh - 1); interior lives at rows [_PAD, _PAD+H)
        acc = jnp.dot(slab[_PAD - 1:_PAD - 1 + H, :], a_ref[0],
                      preferred_element_type=jnp.float32)
        acc = acc + jnp.dot(slab[_PAD:_PAD + H, :], a_ref[1],
                            preferred_element_type=jnp.float32)
        acc = acc + jnp.dot(slab[_PAD + 1:_PAD + 1 + H, :], a_ref[2],
                            preferred_element_type=jnp.float32)
        return acc

    # Zero halos, then fill slab interiors (sublane-aligned store at row _PAD).
    xup_slab[...] = jnp.zeros_like(xup_slab)
    skip_slab[...] = jnp.zeros_like(skip_slab)
    y1_slab[...] = jnp.zeros_like(y1_slab)
    xup_slab[_PAD:_PAD + H, :] = xup_ref[0].astype(jnp.float32)
    skip_slab[_PAD:_PAD + H, :] = skip_ref[0].astype(jnp.float32)

    # conv1 (the "upsample" conv): 3 banded matmuls + bias.
    y1 = band_conv(xup_slab, a1_ref) + b1_ref[...]
    y1_slab[_PAD:_PAD + H, :] = y1            # stays in VMEM, never hits HBM

    # conv2: channel concat folded into split-K, then bias + ReLU.
    acc = band_conv(y1_slab, a2x_ref) + band_conv(skip_slab, a2s_ref) + b2_ref[...]
    o_ref[0] = jnp.maximum(acc, 0.0).astype(o_ref.dtype)


def _band_weights(w_hwio, w_out, w_slab, upsample):
    """Build banded weight matrices for a 3x3 SAME conv in lane-flat layout.

    w_hwio: (3, 3, Cin, Cout). Returns (3, w_slab*Cin, w_out*Cout) where
    A[dh][wp*Cin + c, w*Cout + co] sums W[dh, dw, c, co] over taps dw whose
    conv-input column q = w + dw - 1 is in range and maps to slab column
    wp = q//2 (upsample) or wp = q. Out-of-range taps are dropped (zero pad).
    """
    _, _, cin, cout = w_hwio.shape
    dtype = w_hwio.dtype
    cols = jnp.arange(w_out)
    mats = []
    for dh in range(3):
        a = jnp.zeros((w_slab, cin, w_out, cout), dtype)
        for dw in range(3):
            q = cols + dw - 1
            valid = (q >= 0) & (q < w_out)
            qc = jnp.clip(q, 0, w_out - 1)
            src = qc // 2 if upsample else qc
            sel = ((jnp.arange(w_slab)[:, None] == src[None, :])
                   & valid[None, :]).astype(dtype)                 # (w_slab, w_out)
            a = a + sel[:, None, :, None] * w_hwio[dh, dw][None, :, None, :]
        mats.append(a.reshape(w_slab * cin, w_out * cout))
    return jnp.stack(mats, axis=0)


def decoder_block(skip_nchw, x_nchw, params):
    """Forward pass of DecoderBlock. Inputs/outputs are NCHW like PyTorch."""
    N, Cin, Hx, Wx = x_nchw.shape
    _, Cs, Hs, Ws = skip_nchw.shape
    mid = params["w_up"].shape[-1]
    out_c = params["w_out"].shape[-1]

    # Layout plumbing: NCHW -> lane-flattened (N, H, W*C). The H-direction 2x
    # repeat (tiny) fuses into this transpose; W-repeat lives in the band matrix.
    x = jnp.transpose(x_nchw, (0, 2, 3, 1))                 # (N, Hx, Wx, Cin)
    x = jnp.repeat(x, 2, axis=1).reshape(N, Hs, Wx * Cin)   # (N, Hs, Wx*Cin)
    skip = jnp.transpose(skip_nchw, (0, 2, 3, 1)).reshape(N, Hs, Ws * Cs)

    a1 = _band_weights(params["w_up"], Ws, Wx, upsample=True)
    a2x = _band_weights(params["w_out"][:, :, :mid, :], Ws, Ws, upsample=False)
    a2s = _band_weights(params["w_out"][:, :, mid:, :], Ws, Ws, upsample=False)
    b1 = jnp.tile(params["b_up"], Ws).reshape(1, Ws * mid)
    b2 = jnp.tile(params["b_out"], Ws).reshape(1, Ws * out_c)

    out_flat = pl.pallas_call(
        _decoder_kernel,
        out_shape=jax.ShapeDtypeStruct((N, Hs, Ws * out_c), x_nchw.dtype),
        grid_spec=pltpu.PrefetchScalarGridSpec(
            num_scalar_prefetch=0,
            grid=(N,),
            in_specs=[
                pl.BlockSpec((1, Hs, Wx * Cin), lambda n: (n, 0, 0)),
                pl.BlockSpec((1, Hs, Ws * Cs), lambda n: (n, 0, 0)),
                pl.BlockSpec((3, Wx * Cin, Ws * mid), lambda n: (0, 0, 0)),
                pl.BlockSpec((1, Ws * mid), lambda n: (0, 0)),
                pl.BlockSpec((3, Ws * mid, Ws * out_c), lambda n: (0, 0, 0)),
                pl.BlockSpec((3, Ws * Cs, Ws * out_c), lambda n: (0, 0, 0)),
                pl.BlockSpec((1, Ws * out_c), lambda n: (0, 0)),
            ],
            out_specs=pl.BlockSpec((1, Hs, Ws * out_c), lambda n: (n, 0, 0)),
            scratch_shapes=[
                pltpu.VMEM((Hs + 2 * _PAD, Wx * Cin), jnp.float32),
                pltpu.VMEM((Hs + 2 * _PAD, Ws * mid), jnp.float32),
                pltpu.VMEM((Hs + 2 * _PAD, Ws * Cs), jnp.float32),
            ],
        ),
        compiler_params=pltpu.CompilerParams(
            dimension_semantics=("parallel",),
            vmem_limit_bytes=32 * 1024 * 1024,
        ),
    )(x, skip, a1, b1, a2x, a2s, b2)

    out = out_flat.reshape(N, Hs, Ws, out_c)
    return jnp.transpose(out, (0, 3, 1, 2))                 # back to NCHW


def _conv_ref(x_nhwc, w, b):
    y = jax.lax.conv_general_dilated(
        x_nhwc, w, window_strides=(1, 1), padding="SAME",
        dimension_numbers=("NHWC", "HWIO", "NHWC"))
    return y + b


def decoder_block_ref(skip_nchw, x_nchw, params):
    x = jnp.transpose(x_nchw, (0, 2, 3, 1))
    skip = jnp.transpose(skip_nchw, (0, 2, 3, 1))
    x = jnp.repeat(jnp.repeat(x, 2, axis=1), 2, axis=2)
    x = _conv_ref(x, params["w_up"], params["b_up"])
    cat = jnp.concatenate([x, skip], axis=-1)
    out = jnp.maximum(_conv_ref(cat, params["w_out"], params["b_out"]), 0.0)
    return jnp.transpose(out, (0, 3, 1, 2))


if __name__ == "__main__":
    # skip_channel=4, in_channel=4, middle_channel=8, out_channel=8
    N = 2
    skip_c, in_c, mid_c, out_c = 4, 4, 8, 8
    Hs = Ws = 16                 # skip spatial size
    Hx, Wx = Hs // 2, Ws // 2    # x spatial size (gets upsampled x2)

    key = jax.random.PRNGKey(0)
    k1, k2, k3, k4, k5, k6 = jax.random.split(key, 6)

    skip = jax.random.normal(k1, (N, skip_c, Hs, Ws), jnp.float32)
    x = jax.random.normal(k2, (N, in_c, Hx, Wx), jnp.float32)

    params = {
        "w_up": jax.random.normal(k3, (3, 3, in_c, mid_c), jnp.float32)
                * (1.0 / (3 * 3 * in_c)) ** 0.5,
        "b_up": jax.random.normal(k4, (mid_c,), jnp.float32) * 0.1,
        "w_out": jax.random.normal(k5, (3, 3, mid_c + skip_c, out_c), jnp.float32)
                 * (1.0 / (3 * 3 * (mid_c + skip_c))) ** 0.5,
        "b_out": jax.random.normal(k6, (out_c,), jnp.float32) * 0.1,
    }

    out = jax.jit(decoder_block)(skip, x, params)
    out = jax.block_until_ready(out)

    ref = jax.block_until_ready(decoder_block_ref(skip, x, params))
    assert out.shape == (N, out_c, Hs, Ws), out.shape
    assert jnp.allclose(out, ref, atol=1e-4, rtol=1e-4), float(
        jnp.max(jnp.abs(out - ref)))

    print("KERNEL_OK")
</pallas_src>

<mosaic_0001>
module attributes {stable_mosaic.version = 11 : i64} {
  func.func @_decoder_kernel(%arg0: i32, %arg1: memref<1x16x32xf32, #tpu.memory_space<vmem>>, %arg2: memref<1x16x64xf32, #tpu.memory_space<vmem>>, %arg3: memref<3x32x128xf32, #tpu.memory_space<vmem>>, %arg4: memref<1x128xf32, #tpu.memory_space<vmem>>, %arg5: memref<3x128x128xf32, #tpu.memory_space<vmem>>, %arg6: memref<3x64x128xf32, #tpu.memory_space<vmem>>, %arg7: memref<1x128xf32, #tpu.memory_space<vmem>>, %arg8: memref<1x16x128xf32, #tpu.memory_space<vmem>>, %arg9: memref<32x32xf32, #tpu.memory_space<vmem>>, %arg10: memref<32x128xf32, #tpu.memory_space<vmem>>, %arg11: memref<32x64xf32, #tpu.memory_space<vmem>>) attributes {dimension_semantics = [#tpu.dimension_semantics<parallel>], iteration_bounds = array<i64: 2>, scalar_prefetch = 0 : i64, scratch_operands = 3 : i64, tpu.core_type = #tpu.core_type<tc>, window_params = [{transform_indices = @transform_0, window_bounds = array<i64: 1, 16, 32>}, {transform_indices = @transform_1, window_bounds = array<i64: 1, 16, 64>}, {pipeline_mode = #tpu.pipeline_mode<synchronous>, transform_indices = @transform_2, window_bounds = array<i64: 3, 32, 128>}, {pipeline_mode = #tpu.pipeline_mode<synchronous>, transform_indices = @transform_3, window_bounds = array<i64: 1, 128>}, {pipeline_mode = #tpu.pipeline_mode<synchronous>, transform_indices = @transform_4, window_bounds = array<i64: 3, 128, 128>}, {pipeline_mode = #tpu.pipeline_mode<synchronous>, transform_indices = @transform_5, window_bounds = array<i64: 3, 64, 128>}, {pipeline_mode = #tpu.pipeline_mode<synchronous>, transform_indices = @transform_6, window_bounds = array<i64: 1, 128>}, {transform_indices = @transform_7, window_bounds = array<i64: 1, 16, 128>}]} {
    %cst = arith.constant 0.000000e+00 : f32
    %0 = vector.broadcast %cst : f32 to vector<32x32xf32>
    %c0 = arith.constant 0 : index
    %c0_0 = arith.constant 0 : index
    %1 = vector.load %arg9[%c0, %c0_0] : memref<32x32xf32, #tpu.memory_space<vmem>>, vector<32x32xf32>
    tpu.vector_store %arg9[%c0, %c0_0], %0 {strides = array<i32>} : memref<32x32xf32, #tpu.memory_space<vmem>>, vector<32x32xf32>,
    %cst_1 = arith.constant 0.000000e+00 : f32
    %2 = vector.broadcast %cst_1 : f32 to vector<32x64xf32>
    %c0_2 = arith.constant 0 : index
    %c0_3 = arith.constant 0 : index
    %3 = vector.load %arg11[%c0_2, %c0_3] : memref<32x64xf32, #tpu.memory_space<vmem>>, vector<32x64xf32>
    tpu.vector_store %arg11[%c0_2, %c0_3], %2 {strides = array<i32>} : memref<32x64xf32, #tpu.memory_space<vmem>>, vector<32x64xf32>,
    %cst_4 = arith.constant 0.000000e+00 : f32
    %4 = vector.broadcast %cst_4 : f32 to vector<32x128xf32>
    %c0_5 = arith.constant 0 : index
    %c0_6 = arith.constant 0 : index
    %5 = vector.load %arg10[%c0_5, %c0_6] : memref<32x128xf32, #tpu.memory_space<vmem>>, vector<32x128xf32>
    tpu.vector_store %arg10[%c0_5, %c0_6], %4 {strides = array<i32>} : memref<32x128xf32, #tpu.memory_space<vmem>>, vector<32x128xf32>,
    %c0_7 = arith.constant 0 : index
    %c0_8 = arith.constant 0 : index
    %c0_9 = arith.constant 0 : index
    %6 = vector.load %arg1[%c0_7, %c0_8, %c0_9] : memref<1x16x32xf32, #tpu.memory_space<vmem>>, vector<1x16x32xf32>
    %7 = vector.shape_cast %6 : vector<1x16x32xf32> to vector<16x32xf32>
    %c8 = arith.constant 8 : index
    %c0_10 = arith.constant 0 : index
    %8 = vector.load %arg9[%c8, %c0_10] : memref<32x32xf32, #tpu.memory_space<vmem>>, vector<16x32xf32>
    tpu.vector_store %arg9[%c8, %c0_10], %7 {strides = array<i32>} : memref<32x32xf32, #tpu.memory_space<vmem>>, vector<16x32xf32>,
    %c0_11 = arith.constant 0 : index
    %c0_12 = arith.constant 0 : index
    %c0_13 = arith.constant 0 : index
    %9 = vector.load %arg2[%c0_11, %c0_12, %c0_13] : memref<1x16x64xf32, #tpu.memory_space<vmem>>, vector<1x16x64xf32>
    %10 = vector.shape_cast %9 : vector<1x16x64xf32> to vector<16x64xf32>
    %c8_14 = arith.constant 8 : index
    %c0_15 = arith.constant 0 : index
    %11 = vector.load %arg11[%c8_14, %c0_15] : memref<32x64xf32, #tpu.memory_space<vmem>>, vector<16x64xf32>
    tpu.vector_store %arg11[%c8_14, %c0_15], %10 {strides = array<i32>} : memref<32x64xf32, #tpu.memory_space<vmem>>, vector<16x64xf32>,
    %c7 = arith.constant 7 : index
    %c0_16 = arith.constant 0 : index
    %12 = vector.load %arg9[%c7, %c0_16] : memref<32x32xf32, #tpu.memory_space<vmem>>, vector<16x32xf32>
    %c0_17 = arith.constant 0 : index
    %c0_18 = arith.constant 0 : index
    %c0_19 = arith.constant 0 : index
    %13 = vector.load %arg3[%c0_17, %c0_18, %c0_19] : memref<3x32x128xf32, #tpu.memory_space<vmem>>, vector<1x32x128xf32>
    %14 = vector.shape_cast %13 : vector<1x32x128xf32> to vector<32x128xf32>
    %cst_20 = arith.constant dense<0.000000e+00> : vector<16x128xf32>
    %15 = tpu.matmul %12, %14, %cst_20 {dimension_numbers = #tpu.dot_dimension_numbers<[1], [0], [0], [1], [0, 0, 1, 1], [], []>} : vector<16x32xf32>, vector<32x128xf32>, vector<16x128xf32> -> vector<16x128xf32>
    %c8_21 = arith.constant 8 : index
    %c0_22 = arith.constant 0 : index
    %16 = vector.load %arg9[%c8_21, %c0_22] : memref<32x32xf32, #tpu.memory_space<vmem>>, vector<16x32xf32>
    %c1 = arith.constant 1 : index
    %c0_23 = arith.constant 0 : index
    %c0_24 = arith.constant 0 : index
    %17 = vector.load %arg3[%c1, %c0_23, %c0_24] : memref<3x32x128xf32, #tpu.memory_space<vmem>>, vector<1x32x128xf32>
    %18 = vector.shape_cast %17 : vector<1x32x128xf32> to vector<32x128xf32>
    %cst_25 = arith.constant dense<0.000000e+00> : vector<16x128xf32>
    %19 = tpu.matmul %16, %18, %cst_25 {dimension_numbers = #tpu.dot_dimension_numbers<[1], [0], [0], [1], [0, 0, 1, 1], [], []>} : vector<16x32xf32>, vector<32x128xf32>, vector<16x128xf32> -> vector<16x128xf32>
    %20 = arith.addf %15, %19 : vector<16x128xf32>
    %c9 = arith.constant 9 : index
    %c0_26 = arith.constant 0 : index
    %21 = vector.load %arg9[%c9, %c0_26] : memref<32x32xf32, #tpu.memory_space<vmem>>, vector<16x32xf32>
    %c2 = arith.constant 2 : index
    %c0_27 = arith.constant 0 : index
    %c0_28 = arith.constant 0 : index
    %22 = vector.load %arg3[%c2, %c0_27, %c0_28] : memref<3x32x128xf32, #tpu.memory_space<vmem>>, vector<1x32x128xf32>
    %23 = vector.shape_cast %22 : vector<1x32x128xf32> to vector<32x128xf32>
    %cst_29 = arith.constant dense<0.000000e+00> : vector<16x128xf32>
    %24 = tpu.matmul %21, %23, %cst_29 {dimension_numbers = #tpu.dot_dimension_numbers<[1], [0], [0], [1], [0, 0, 1, 1], [], []>} : vector<16x32xf32>, vector<32x128xf32>, vector<16x128xf32> -> vector<16x128xf32>
    %25 = arith.addf %20, %24 : vector<16x128xf32>
    %c0_30 = arith.constant 0 : index
    %c0_31 = arith.constant 0 : index
    %26 = vector.load %arg4[%c0_30, %c0_31] : memref<1x128xf32, #tpu.memory_space<vmem>>, vector<1x128xf32>
    %27 = vector.broadcast %26 : vector<1x128xf32> to vector<16x128xf32>
    %28 = arith.addf %25, %27 : vector<16x128xf32>
    %c8_32 = arith.constant 8 : index
    %c0_33 = arith.constant 0 : index
    %29 = vector.load %arg10[%c8_32, %c0_33] : memref<32x128xf32, #tpu.memory_space<vmem>>, vector<16x128xf32>
    tpu.vector_store %arg10[%c8_32, %c0_33], %28 {strides = array<i32>} : memref<32x128xf32, #tpu.memory_space<vmem>>, vector<16x128xf32>,
    %c7_34 = arith.constant 7 : index
    %c0_35 = arith.constant 0 : index
    %30 = vector.load %arg10[%c7_34, %c0_35] : memref<32x128xf32, #tpu.memory_space<vmem>>, vector<16x128xf32>
    %c0_36 = arith.constant 0 : index
    %c0_37 = arith.constant 0 : index
    %c0_38 = arith.constant 0 : index
    %31 = vector.load %arg5[%c0_36, %c0_37, %c0_38] : memref<3x128x128xf32, #tpu.memory_space<vmem>>, vector<1x128x128xf32>
    %32 = vector.shape_cast %31 : vector<1x128x128xf32> to vector<128x128xf32>
    %cst_39 = arith.constant dense<0.000000e+00> : vector<16x128xf32>
    %33 = tpu.matmul %30, %32, %cst_39 {dimension_numbers = #tpu.dot_dimension_numbers<[1], [0], [0], [1], [0, 0, 1, 1], [], []>} : vector<16x128xf32>, vector<128x128xf32>, vector<16x128xf32> -> vector<16x128xf32>
    %c8_40 = arith.constant 8 : index
    %c0_41 = arith.constant 0 : index
    %34 = vector.load %arg10[%c8_40, %c0_41] : memref<32x128xf32, #tpu.memory_space<vmem>>, vector<16x128xf32>
    %c1_42 = arith.constant 1 : index
    %c0_43 = arith.constant 0 : index
    %c0_44 = arith.constant 0 : index
    %35 = vector.load %arg5[%c1_42, %c0_43, %c0_44] : memref<3x128x128xf32, #tpu.memory_space<vmem>>, vector<1x128x128xf32>
    %36 = vector.shape_cast %35 : vector<1x128x128xf32> to vector<128x128xf32>
    %cst_45 = arith.constant dense<0.000000e+00> : vector<16x128xf32>
    %37 = tpu.matmul %34, %36, %cst_45 {dimension_numbers = #tpu.dot_dimension_numbers<[1], [0], [0], [1], [0, 0, 1, 1], [], []>} : vector<16x128xf32>, vector<128x128xf32>, vector<16x128xf32> -> vector<16x128xf32>
    %38 = arith.addf %33, %37 : vector<16x128xf32>
    %c9_46 = arith.constant 9 : index
    %c0_47 = arith.constant 0 : index
    %39 = vector.load %arg10[%c9_46, %c0_47] : memref<32x128xf32, #tpu.memory_space<vmem>>, vector<16x128xf32>
    %c2_48 = arith.constant 2 : index
    %c0_49 = arith.constant 0 : index
    %c0_50 = arith.constant 0 : index
    %40 = vector.load %arg5[%c2_48, %c0_49, %c0_50] : memref<3x128x128xf32, #tpu.memory_space<vmem>>, vector<1x128x128xf32>
    %41 = vector.shape_cast %40 : vector<1x128x128xf32> to vector<128x128xf32>
    %cst_51 = arith.constant dense<0.000000e+00> : vector<16x128xf32>
    %42 = tpu.matmul %39, %41, %cst_51 {dimension_numbers = #tpu.dot_dimension_numbers<[1], [0], [0], [1], [0, 0, 1, 1], [], []>} : vector<16x128xf32>, vector<128x128xf32>, vector<16x128xf32> -> vector<16x128xf32>
    %43 = arith.addf %38, %42 : vector<16x128xf32>
    %c7_52 = arith.constant 7 : index
    %c0_53 = arith.constant 0 : index
    %44 = vector.load %arg11[%c7_52, %c0_53] : memref<32x64xf32, #tpu.memory_space<vmem>>, vector<16x64xf32>
    %c0_54 = arith.constant 0 : index
    %c0_55 = arith.constant 0 : index
    %c0_56 = arith.constant 0 : index
    %45 = vector.load %arg6[%c0_54, %c0_55, %c0_56] : memref<3x64x128xf32, #tpu.memory_space<vmem>>, vector<1x64x128xf32>
    %46 = vector.shape_cast %45 : vector<1x64x128xf32> to vector<64x128xf32>
    %cst_57 = arith.constant dense<0.000000e+00> : vector<16x128xf32>
    %47 = tpu.matmul %44, %46, %cst_57 {dimension_numbers = #tpu.dot_dimension_numbers<[1], [0], [0], [1], [0, 0, 1, 1], [], []>} : vector<16x64xf32>, vector<64x128xf32>, vector<16x128xf32> -> vector<16x128xf32>
    %c8_58 = arith.constant 8 : index
    %c0_59 = arith.constant 0 : index
    %48 = vector.load %arg11[%c8_58, %c0_59] : memref<32x64xf32, #tpu.memory_space<vmem>>, vector<16x64xf32>
    %c1_60 = arith.constant 1 : index
    %c0_61 = arith.constant 0 : index
    %c0_62 = arith.constant 0 : index
    %49 = vector.load %arg6[%c1_60, %c0_61, %c0_62] : memref<3x64x128xf32, #tpu.memory_space<vmem>>, vector<1x64x128xf32>
    %50 = vector.shape_cast %49 : vector<1x64x128xf32> to vector<64x128xf32>
    %cst_63 = arith.constant dense<0.000000e+00> : vector<16x128xf32>
    %51 = tpu.matmul %48, %50, %cst_63 {dimension_numbers = #tpu.dot_dimension_numbers<[1], [0], [0], [1], [0, 0, 1, 1], [], []>} : vector<16x64xf32>, vector<64x128xf32>, vector<16x128xf32> -> vector<16x128xf32>
    %52 = arith.addf %47, %51 : vector<16x128xf32>
    %c9_64 = arith.constant 9 : index
    %c0_65 = arith.constant 0 : index
    %53 = vector.load %arg11[%c9_64, %c0_65] : memref<32x64xf32, #tpu.memory_space<vmem>>, vector<16x64xf32>
    %c2_66 = arith.constant 2 : index
    %c0_67 = arith.constant 0 : index
    %c0_68 = arith.constant 0 : index
    %54 = vector.load %arg6[%c2_66, %c0_67, %c0_68] : memref<3x64x128xf32, #tpu.memory_space<vmem>>, vector<1x64x128xf32>
    %55 = vector.shape_cast %54 : vector<1x64x128xf32> to vector<64x128xf32>
    %cst_69 = arith.constant dense<0.000000e+00> : vector<16x128xf32>
    %56 = tpu.matmul %53, %55, %cst_69 {dimension_numbers = #tpu.dot_dimension_numbers<[1], [0], [0], [1], [0, 0, 1, 1], [], []>} : vector<16x64xf32>, vector<64x128xf32>, vector<16x128xf32> -> vector<16x128xf32>
    %57 = arith.addf %52, %56 : vector<16x128xf32>
    %58 = arith.addf %43, %57 : vector<16x128xf32>
    %c0_70 = arith.constant 0 : index
    %c0_71 = arith.constant 0 : index
    %59 = vector.load %arg7[%c0_70, %c0_71] : memref<1x128xf32, #tpu.memory_space<vmem>>, vector<1x128xf32>
    %60 = vector.broadcast %59 : vector<1x128xf32> to vector<16x128xf32>
    %61 = arith.addf %58, %60 : vector<16x128xf32>
    %cst_72 = arith.constant 0.000000e+00 : f32
    %62 = vector.broadcast %cst_72 : f32 to vector<16x128xf32>
    %63 = arith.maximumf %61, %62 : vector<16x128xf32>
    %c0_73 = arith.constant 0 : index
    %c0_74 = arith.constant 0 : index
    %c0_75 = arith.constant 0 : index
    %64 = vector.load %arg8[%c0_73, %c0_74, %c0_75] : memref<1x16x128xf32, #tpu.memory_space<vmem>>, vector<1x16x128xf32>
    %65 = vector.shape_cast %64 : vector<1x16x128xf32> to vector<16x128xf32>
    %66 = vector.shape_cast %63 : vector<16x128xf32> to vector<1x16x128xf32>
    tpu.vector_store %arg8[%c0_73, %c0_74, %c0_75], %66 {strides = array<i32>} : memref<1x16x128xf32, #tpu.memory_space<vmem>>, vector<1x16x128xf32>,
    return
  }
  func.func @transform_0(%arg0: i32) -> (i32, i32, i32) {
    %c0_i32 = arith.constant 0 : i32
    %c0_i32_0 = arith.constant 0 : i32
    %c0_i32_1 = arith.constant 0 : i32
    return %arg0, %c0_i32, %c0_i32_0 : i32, i32, i32
  }
  func.func @transform_1(%arg0: i32) -> (i32, i32, i32) {
    %c0_i32 = arith.constant 0 : i32
    %c0_i32_0 = arith.constant 0 : i32
    %c0_i32_1 = arith.constant 0 : i32
    return %arg0, %c0_i32, %c0_i32_0 : i32, i32, i32
  }
  func.func @transform_2(%arg0: i32) -> (i32, i32, i32) {
    %c0_i32 = arith.constant 0 : i32
    %c0_i32_0 = arith.constant 0 : i32
    %c0_i32_1 = arith.constant 0 : i32
    %c0_i32_2 = arith.constant 0 : i32
    return %c0_i32, %c0_i32_0, %c0_i32_1 : i32, i32, i32
  }
  func.func @transform_3(%arg0: i32) -> (i32, i32) {
    %c0_i32 = arith.constant 0 : i32
    %c0_i32_0 = arith.constant 0 : i32
    %c0_i32_1 = arith.constant 0 : i32
    return %c0_i32, %c0_i32_0 : i32, i32
  }
  func.func @transform_4(%arg0: i32) -> (i32, i32, i32) {
    %c0_i32 = arith.constant 0 : i32
    %c0_i32_0 = arith.constant 0 : i32
    %c0_i32_1 = arith.constant 0 : i32
    %c0_i32_2 = arith.constant 0 : i32
    return %c0_i32, %c0_i32_0, %c0_i32_1 : i32, i32, i32
  }
  func.func @transform_5(%arg0: i32) -> (i32, i32, i32) {
    %c0_i32 = arith.constant 0 : i32
    %c0_i32_0 = arith.constant 0 : i32
    %c0_i32_1 = arith.constant 0 : i32
    %c0_i32_2 = arith.constant 0 : i32
    return %c0_i32, %c0_i32_0, %c0_i32_1 : i32, i32, i32
  }
  func.func @transform_6(%arg0: i32) -> (i32, i32) {
    %c0_i32 = arith.constant 0 : i32
    %c0_i32_0 = arith.constant 0 : i32
    %c0_i32_1 = arith.constant 0 : i32
    return %c0_i32, %c0_i32_0 : i32, i32
  }
  func.func @transform_7(%arg0: i32) -> (i32, i32, i32) {
    %c0_i32 = arith.constant 0 : i32
    %c0_i32_0 = arith.constant 0 : i32
    %c0_i32_1 = arith.constant 0 : i32
    return %arg0, %c0_i32, %c0_i32_0 : i32, i32, i32
  }
}

</mosaic_0001>

<llo_original>
// kernel: tile.13
$region0: #{tile.13}
  #allocation0 [shape = 's32[1]{0}', space=sflag, size = 0x4, scoped, tag = 'scoped memory for tile.13']
  %s0 = inlined_call_operand.vmem [shape: f32[8], index: 0, kind: input, shape index: {}]
  %s1 = inlined_call_operand.vmem [shape: f32[16,8], index: 1, kind: output, shape index: {}]
  // Predicated region
  $region2: #{tile.13} parent=0 // pred_check
    _
  $region3: #{tile.13} parent=0 // pred_check_branch
    %3 = sbr.rel (0) target = $region5
  $region4: #{tile.13} parent=0 // pred_region
    _
  $region5: #{tile.13} parent=0 // pred_fallthru
    _
  %v4 = vld [vmem:[%s0] ss:$0 sm:$0xff]
  %5 = vst [vmem:[%s1] sm:$0xff] %v4
  %s6 = scalar_lea.vmem %s1, 8
  %7 = vst [vmem:[%s6] sm:$0xff] %v4

// kernel: tile.14
$region0: #{tile.14}
  %s0 = inlined_call_operand.vmem [shape: f32[16,8], index: 0, kind: input, shape index: {}]
  %s1 = inlined_call_operand.vmem [shape: f32[1,128], index: 1, kind: output, shape index: {}]
  $region1: #{tile.14} parent=0
    #allocation0 [shape = 'u8[4096]{0}', space=vmem, size = 0x1000, scoped, tag = 'scoped mem for output reshape']
    %v2 = vld [vmem:[%s0] sm:$0x1]
    %vm3 = vcmask 64512
    %4 = vst.msk [vmem:[#allocation0] sm:$0x1] %vm3, %v2
    %s5 = scalar_lea.vmem %s0, 15
    %v6 = vld [vmem:[%s5] sm:$0x1]
    %7 = vrot.lane.b32.xlu0 %v6, 120
    %v8 = vpop.permute.xlu0 %7
    %vm9 = vcmask 1048512
    %10 = vst.msk [vmem:[#allocation0] sm:$0x1] %vm9, %v8
    %s11 = scalar_lea.vmem %s0, 14
    %v12 = vld [vmem:[%s11] sm:$0x1]
    %13 = vrot.lane.b32.xlu0 %v12, 112
    %v14 = vpop.permute.xlu0 %13
    %vm15 = vcmask 982912
    %16 = vst.msk [vmem:[#allocation0] sm:$0x1] %vm15, %v14
    %s17 = scalar_lea.vmem %s0, 13
    %v18 = vld [vmem:[%s17] sm:$0x1]
    %19 = vrot.lane.b32.xlu0 %v18, 104
    %v20 = vpop.permute.xlu0 %19
    %vm21 = vcmask 917312
    %22 = vst.msk [vmem:[#allocation0] sm:$0x1] %vm21, %v20
    %s23 = scalar_lea.vmem %s0, 12
    %v24 = vld [vmem:[%s23] sm:$0x1]
    %25 = vrot.lane.b32.xlu0 %v24, 96
    %v26 = vpop.permute.xlu0 %25
    %vm27 = vcmask 851712
    %28 = vst.msk [vmem:[#allocation0] sm:$0x1] %vm27, %v26
    %s29 = scalar_lea.vmem %s0, 11
    %v30 = vld [vmem:[%s29] sm:$0x1]
    %31 = vrot.lane.b32.xlu0 %v30, 88
    %v32 = vpop.permute.xlu0 %31
    %vm33 = vcmask 786112
    %34 = vst.msk [vmem:[#allocation0] sm:$0x1] %vm33, %v32
    %s35 = scalar_lea.vmem %s0, 10
    %v36 = vld [vmem:[%s35] sm:$0x1]
    %37 = vrot.lane.b32.xlu0 %v36, 80
    %v38 = vpop.permute.xlu0 %37
    %vm39 = vcmask 720512
    %40 = vst.msk [vmem:[#allocation0] sm:$0x1] %vm39, %v38
    %s41 = scalar_lea.vmem %s0, 9
    %v42 = vld [vmem:[%s41] sm:$0x1]
    %43 = vrot.lane.b32.xlu0 %v42, 72
    %v44 = vpop.permute.xlu0 %43
    %vm45 = vcmask 654912
    %46 = vst.msk [vmem:[#allocation0] sm:$0x1] %vm45, %v44
    %s47 = scalar_lea.vmem %s0, 8
    %v48 = vld [vmem:[%s47] sm:$0x1]
    %49 = vrot.lane.b32.xlu0 %v48, 64
    %v50 = vpop.permute.xlu0 %49
    %vm51 = vcmask 589312
    %52 = vst.msk [vmem:[#allocation0] sm:$0x1] %vm51, %v50
    %s53 = scalar_lea.vmem %s0, 7
    %v54 = vld [vmem:[%s53] sm:$0x1]
    %55 = vrot.lane.b32.xlu0 %v54, 56
    %v56 = vpop.permute.xlu0 %55
    %vm57 = vcmask 523712
    %58 = vst.msk [vmem:[#allocation0] sm:$0x1] %vm57, %v56
    %s59 = scalar_lea.vmem %s0, 6
    %v60 = vld [vmem:[%s59] sm:$0x1]
    %61 = vrot.lane.b32.xlu0 %v60, 48
    %v62 = vpop.permute.xlu0 %61
    %vm63 = vcmask 458112
    %64 = vst.msk [vmem:[#allocation0] sm:$0x1] %vm63, %v62
    %s65 = scalar_lea.vmem %s0, 5
    %v66 = vld [vmem:[%s65] sm:$0x1]
    %67 = vrot.lane.b32.xlu0 %v66, 40
    %v68 = vpop.permute.xlu0 %67
    %vm69 = vcmask 392512
    %70 = vst.msk [vmem:[#allocation0] sm:$0x1] %vm69, %v68
    %s71 = scalar_lea.vmem %s0, 4
    %v72 = vld [vmem:[%s71] sm:$0x1]
    %73 = vrot.lane.b32.xlu0 %v72, 32
    %v74 = vpop.permute.xlu0 %73
    %vm75 = vcmask 326912
    %76 = vst.msk [vmem:[#allocation0] sm:$0x1] %vm75, %v74
    %s77 = scalar_lea.vmem %s0, 3
    %v78 = vld [vmem:[%s77] sm:$0x1]
    %79 = vrot.lane.b32.xlu0 %v78, 24
    %v80 = vpop.permute.xlu0 %79
    %vm81 = vcmask 261312
    %82 = vst.msk [vmem:[#allocation0] sm:$0x1] %vm81, %v80
    %s83 = scalar_lea.vmem %s0, 2
    %v84 = vld [vmem:[%s83] sm:$0x1]
    %85 = vrot.lane.b32.xlu0 %v84, 16
    %v86 = vpop.permute.xlu0 %85
    %vm87 = vcmask 195712
    %88 = vst.msk [vmem:[#allocation0] sm:$0x1] %vm87, %v86
    %s89 = scalar_lea.vmem %s0, 1
    %v90 = vld [vmem:[%s89] sm:$0x1]
    %91 = vrot.lane.b32.xlu0 %v90, 8
    %v92 = vpop.permute.xlu0 %91
    %vm93 = vcmask 130112
    %94 = vst.msk [vmem:[#allocation0] sm:$0x1] %vm93, %v92
    %s96 = sshllo.u32 0, 1
    %v98 = vld [vmem:[#allocation0] sm:%s96]
    %s99 = sshllo.u32 0, 1
    %100 = vst [vmem:[%s1] sm:%s99] %v98

// kernel: decoder_block.1
$region0: #{decoder_block.1}
  #allocation0 [shape = 'u32[]', space=smem, size = 0x4, offset = 0x4, fixed_abs, tag = 'smem constant byte address 0x4 - core index']
  #allocation1 [shape = 'u32[144,128]{1,0:T(1,128)}', space=vmem, size = 0x12000, scoped, tag = 'internal scratch']
  #allocation2 [shape = 'f32[32,32]{1,0:T(8,128)}', space=vmem, size = 0x4000, scoped, tag = 'scratch operand']
  #allocation3 [shape = 'f32[32,128]{1,0:T(8,128)}', space=vmem, size = 0x4000, scoped, tag = 'scratch operand']
  #allocation4 [shape = 'f32[32,64]{1,0:T(8,128)}', space=vmem, size = 0x4000, scoped, tag = 'scratch operand']
  %s0 = inlined_call_operand.vmem [shape: f32[2,16,32], index: 0, kind: input, shape index: {}]
  %s1 = inlined_call_operand.vmem [shape: f32[2,16,64], index: 1, kind: input, shape index: {}]
  %s2 = inlined_call_operand.vmem [shape: f32[3,32,128], index: 2, kind: input, shape index: {}]
  %s3 = inlined_call_operand.vmem [shape: f32[1,128], index: 3, kind: input, shape index: {}]
  %s4 = inlined_call_operand.vmem [shape: f32[3,128,128], index: 4, kind: input, shape index: {}]
  %s5 = inlined_call_operand.vmem [shape: f32[3,64,128], index: 5, kind: input, shape index: {}]
  %s6 = inlined_call_operand.vmem [shape: f32[1,128], index: 6, kind: input, shape index: {}]
  %s7 = inlined_call_operand.vmem [shape: f32[2,16,128], index: 7, kind: output, shape index: {}]
  %s8 = sld [smem:[#allocation0]]
  $region61: #{decoder_block.1} parent=0
    _
  %s10 = ssub.s32 1, %s8
  %s11 = scalar_select 0, %s10, %s8
  loop: start=0, step=1, limit=4
  $region2: #{decoder_block.1} parent=0 // loop_pre_header
    _
  $region3: #{decoder_block.1} parent=0 // loop_header
    %s13 = sphi 0, %s17
    %p14 = scmp.ge.s32.totalorder %s13, 4
    %s23 = sphi 0, %s25
    %s26 = sphi 0, %s23
    %s27 = sphi 0, %s26
    %s43 = sphi 0, %s27
    %s49 = sphi 0, %s51
    %s52 = sphi 0, %s49
    %s53 = sphi 0, %s52
    %s69 = sphi 0, %s53
    %s73 = sphi 0, %s73
    %s75 = sphi 0, %s73
    %s76 = sphi 0, %s75
    %s90 = sphi 0, %s76
    %s94 = sphi 0, %s94
    %s96 = sphi 0, %s94
    %s97 = sphi 0, %s96
    %s111 = sphi 0, %s97
    %s115 = sphi 0, %s115
    %s117 = sphi 0, %s115
    %s118 = sphi 0, %s117
    %s132 = sphi 0, %s118
    %s136 = sphi 0, %s136
    %s138 = sphi 0, %s136
    %s139 = sphi 0, %s138
    %s153 = sphi 0, %s139
    %s157 = sphi 0, %s157
    %s159 = sphi 0, %s157
    %s160 = sphi 0, %s159
    %s174 = sphi 0, %s160
    %s180 = sphi 0, %s182
    %s183 = sphi 0, %s180
    %s184 = sphi 0, %s183
    %s200 = sphi 0, %s184
  $region4: #{decoder_block.1} parent=0 // loop_header_branch
    %16 = sbr.rel (%p14) target = $region8
  $region5: #{decoder_block.1} parent=0 // loop_body
    %s18 = ssub.s32 %s13, 1
    %s19 = ssub.s32 %s13, 2
    %s20 = sadd.s32 %s13, 1
    %s21 = ssub.s32 %s13, %s20
    %p22 = scmp.eq.s32.totalorder %s21, 0
    %s24 = sadd.s32 %s23, 1
    %s25 = scalar_select %p22, %s23, %s24
    %p28 = pneg %p22
    %p29 = scmp.eq.s32.totalorder %s13, 1
    %p30 = por %p28, %p29
    %p31 = scmp.ne.s32.totalorder %s23, %s26
    %p32 = scmp.eq.s32.totalorder %s13, 0
    %p33 = por %p31, %p32
    %p34 = scmp.ne.s32.totalorder %s23, %s26
    %p35 = scmp.eq.s32.totalorder %s18, 1
    %p36 = por %p34, %p35
    %p37 = scmp.ne.s32.totalorder %s26, %s27
    %p38 = scmp.eq.s32.totalorder %s18, 0
    %p39 = por %p37, %p38
    %p40 = scmp.ne.s32.totalorder %s26, %s27
    %p41 = scmp.eq.s32.totalorder %s19, 1
    %p42 = por %p40, %p41
    %p44 = scmp.ne.s32.totalorder %s27, %s43
    %p45 = scmp.eq.s32.totalorder %s19, 0
    %p46 = por %p44, %p45
    %s47 = ssub.s32 %s13, %s20
    %p48 = scmp.eq.s32.totalorder %s47, 0
    %s50 = sadd.s32 %s49, 1
    %s51 = scalar_select %p48, %s49, %s50
    %p54 = pneg %p48
    %p55 = scmp.eq.s32.totalorder %s13, 1
    %p56 = por %p54, %p55
    %p57 = scmp.ne.s32.totalorder %s49, %s52
    %p58 = scmp.eq.s32.totalorder %s13, 0
    %p59 = por %p57, %p58
    %p60 = scmp.ne.s32.totalorder %s49, %s52
    %p61 = scmp.eq.s32.totalorder %s18, 1
    %p62 = por %p60, %p61
    %p63 = scmp.ne.s32.totalorder %s52, %s53
    %p64 = scmp.eq.s32.totalorder %s18, 0
    %p65 = por %p63, %p64
    %p66 = scmp.ne.s32.totalorder %s52, %s53
    %p67 = scmp.eq.s32.totalorder %s19, 1
    %p68 = por %p66, %p67
    %p70 = scmp.ne.s32.totalorder %s53, %s69
    %p71 = scmp.eq.s32.totalorder %s19, 0
    %p72 = por %p70, %p71
    %s74 = sadd.s32 %s73, 1
    %p77 = scmp.eq.s32.totalorder %s13, 1
    %p78 = scmp.ne.s32.totalorder %s73, %s75
    %p79 = scmp.eq.s32.totalorder %s13, 0
    %p80 = por %p78, %p79
    %p81 = scmp.ne.s32.totalorder %s73, %s75
    %p82 = scmp.eq.s32.totalorder %s18, 1
    %p83 = por %p81, %p82
    %p84 = scmp.ne.s32.totalorder %s75, %s76
    %p85 = scmp.eq.s32.totalorder %s18, 0
    %p86 = por %p84, %p85
    %p87 = scmp.ne.s32.totalorder %s75, %s76
    %p88 = scmp.eq.s32.totalorder %s19, 1
    %p89 = por %p87, %p88
    %p91 = scmp.ne.s32.totalorder %s76, %s90
    %p92 = scmp.eq.s32.totalorder %s19, 0
    %p93 = por %p91, %p92
    %s95 = sadd.s32 %s94, 1
    %p98 = scmp.eq.s32.totalorder %s13, 1
    %p99 = scmp.ne.s32.totalorder %s94, %s96
    %p100 = scmp.eq.s32.totalorder %s13, 0
    %p101 = por %p99, %p100
    %p102 = scmp.ne.s32.totalorder %s94, %s96
    %p103 = scmp.eq.s32.totalorder %s18, 1
    %p104 = por %p102, %p103
    %p105 = scmp.ne.s32.totalorder %s96, %s97
    %p106 = scmp.eq.s32.totalorder %s18, 0
    %p107 = por %p105, %p106
    %p108 = scmp.ne.s32.totalorder %s96, %s97
    %p109 = scmp.eq.s32.totalorder %s19, 1
    %p110 = por %p108, %p109
    %p112 = scmp.ne.s32.totalorder %s97, %s111
    %p113 = scmp.eq.s32.totalorder %s19, 0
    %p114 = por %p112, %p113
    %s116 = sadd.s32 %s115, 1
    %p119 = scmp.eq.s32.totalorder %s13, 1
    %p120 = scmp.ne.s32.totalorder %s115, %s117
    %p121 = scmp.eq.s32.totalorder %s13, 0
    %p122 = por %p120, %p121
    %p123 = scmp.ne.s32.totalorder %s115, %s117
    %p124 = scmp.eq.s32.totalorder %s18, 1
    %p125 = por %p123, %p124
    %p126 = scmp.ne.s32.totalorder %s117, %s118
    %p127 = scmp.eq.s32.totalorder %s18, 0
    %p128 = por %p126, %p127
    %p129 = scmp.ne.s32.totalorder %s117, %s118
    %p130 = scmp.eq.s32.totalorder %s19, 1
    %p131 = por %p129, %p130
    %p133 = scmp.ne.s32.totalorder %s118, %s132
    %p134 = scmp.eq.s32.totalorder %s19, 0
    %p135 = por %p133, %p134
    %s137 = sadd.s32 %s136, 1
    %p140 = scmp.eq.s32.totalorder %s13, 1
    %p141 = scmp.ne.s32.totalorder %s136, %s138
    %p142 = scmp.eq.s32.totalorder %s13, 0
    %p143 = por %p141, %p142
    %p144 = scmp.ne.s32.totalorder %s136, %s138
    %p145 = scmp.eq.s32.totalorder %s18, 1
    %p146 = por %p144, %p145
    %p147 = scmp.ne.s32.totalorder %s138, %s139
    %p148 = scmp.eq.s32.totalorder %s18, 0
    %p149 = por %p147, %p148
    %p150 = scmp.ne.s32.totalorder %s138, %s139
    %p151 = scmp.eq.s32.totalorder %s19, 1
    %p152 = por %p150, %p151
    %p154 = scmp.ne.s32.totalorder %s139, %s153
    %p155 = scmp.eq.s32.totalorder %s19, 0
    %p156 = por %p154, %p155
    %s158 = sadd.s32 %s157, 1
    %p161 = scmp.eq.s32.totalorder %s13, 1
    %p162 = scmp.ne.s32.totalorder %s157, %s159
    %p163 = scmp.eq.s32.totalorder %s13, 0
    %p164 = por %p162, %p163
    %p165 = scmp.ne.s32.totalorder %s157, %s159
    %p166 = scmp.eq.s32.totalorder %s18, 1
    %p167 = por %p165, %p166
    %p168 = scmp.ne.s32.totalorder %s159, %s160
    %p169 = scmp.eq.s32.totalorder %s18, 0
    %p170 = por %p168, %p169
    %p171 = scmp.ne.s32.totalorder %s159, %s160
    %p172 = scmp.eq.s32.totalorder %s19, 1
    %p173 = por %p171, %p172
    %p175 = scmp.ne.s32.totalorder %s160, %s174
    %p176 = scmp.eq.s32.totalorder %s19, 0
    %p177 = por %p175, %p176
    %s178 = ssub.s32 %s13, %s20
    %p179 = scmp.eq.s32.totalorder %s178, 0
    %s181 = sadd.s32 %s180, 1
    %s182 = scalar_select %p179, %s180, %s181
    %p185 = pneg %p179
    %p186 = scmp.eq.s32.totalorder %s13, 1
    %p187 = por %p185, %p186
    %p188 = scmp.ne.s32.totalorder %s180, %s183
    %p189 = scmp.eq.s32.totalorder %s13, 0
    %p190 = por %p188, %p189
    %p191 = scmp.ne.s32.totalorder %s180, %s183
    %p192 = scmp.eq.s32.totalorder %s18, 1
    %p193 = por %p191, %p192
    %p194 = scmp.ne.s32.totalorder %s183, %s184
    %p195 = scmp.eq.s32.totalorder %s18, 0
    %p196 = por %p194, %p195
    %p197 = scmp.ne.s32.totalorder %s183, %s184
    %p198 = scmp.eq.s32.totalorder %s19, 1
    %p199 = por %p197, %p198
    %p201 = scmp.ne.s32.totalorder %s184, %s200
    %p202 = scmp.eq.s32.totalorder %s19, 0
    %p203 = por %p201, %p202
    %p204 = scmp.le.s32.totalorder 1, %s13
    %p205 = scmp.lt.s32.totalorder %s13, 3
    %p206 = pnand %p204, %p205
    %p207 = pneg %p206
    // Predicated region
    $region9: #{decoder_block.1} parent=5 // pred_check
      _
    $region10: #{decoder_block.1} parent=5 // pred_check_branch
      %209 = sbr.rel (%p206) target = $region12
    $region11: #{decoder_block.1} parent=5 // pred_region
      %s210 = ssub.s32 %s13, 1
      // Predicated region
      $region13: #{decoder_block.1} parent=11 // pred_check
        %p211 = pneg %p86
      $region14: #{decoder_block.1} parent=11 // pred_check_branch
        %213 = sbr.rel (%p211) target = $region16
      $region15: #{decoder_block.1} parent=11 // pred_region
        _
      $region16: #{decoder_block.1} parent=11 // pred_fallthru
        _
      // Predicated region
      $region17: #{decoder_block.1} parent=11 // pred_check
        %p214 = pneg %p107
      $region18: #{decoder_block.1} parent=11 // pred_check_branch
        %216 = sbr.rel (%p214) target = $region20
      $region19: #{decoder_block.1} parent=11 // pred_region
        _
      $region20: #{decoder_block.1} parent=11 // pred_fallthru
        _
      // Predicated region
      $region21: #{decoder_block.1} parent=11 // pred_check
        %p217 = pneg %p128
      $region22: #{decoder_block.1} parent=11 // pred_check_branch
        %219 = sbr.rel (%p217) target = $region24
      $region23: #{decoder_block.1} parent=11 // pred_region
        _
      $region24: #{decoder_block.1} parent=11 // pred_fallthru
        _
      // Predicated region
      $region25: #{decoder_block.1} parent=11 // pred_check
        %p220 = pneg %p149
      $region26: #{decoder_block.1} parent=11 // pred_check_branch
        %222 = sbr.rel (%p220) target = $region28
      $region27: #{decoder_block.1} parent=11 // pred_region
        _
      $region28: #{decoder_block.1} parent=11 // pred_fallthru
        _
      // Predicated region
      $region29: #{decoder_block.1} parent=11 // pred_check
        %p223 = pneg %p170
      $region30: #{decoder_block.1} parent=11 // pred_check_branch
        %225 = sbr.rel (%p223) target = $region32
      $region31: #{decoder_block.1} parent=11 // pred_region
        _
      $region32: #{decoder_block.1} parent=11 // pred_fallthru
        _
    $region12: #{decoder_block.1} parent=5 // pred_fallthru
      _
    %p226 = scmp.lt.s32.totalorder %s13, 2
    // Predicated region
    $region33: #{decoder_block.1} parent=5 // pred_check
      %p227 = pneg %p226
    $region34: #{decoder_block.1} parent=5 // pred_check_branch
      %229 = sbr.rel (%p227) target = $region36
    $region35: #{decoder_block.1} parent=5 // pred_region
      // Predicated region
      $region37: #{decoder_block.1} parent=35 // pred_check
        %p230 = pneg %p33
      $region38: #{decoder_block.1} parent=35 // pred_check_branch
        %232 = sbr.rel (%p230) target = $region40
      $region39: #{decoder_block.1} parent=35 // pred_region
        %p233 = scmp.lt.s32.totalorder %s13, 1
        %s234 = scalar_select %p233, %s13, 1
        %s235 = smul.addr %s234, 2
        %s236 = smul.addr %s235, 8
        %s237 = scalar_lea.vmem %s0, %s236
      $region40: #{decoder_block.1} parent=35 // pred_fallthru
        _
      // Predicated region
      $region41: #{decoder_block.1} parent=35 // pred_check
        %p238 = pneg %p59
      $region42: #{decoder_block.1} parent=35 // pred_check_branch
        %240 = sbr.rel (%p238) target = $region44
      $region43: #{decoder_block.1} parent=35 // pred_region
        %p241 = scmp.lt.s32.totalorder %s13, 1
        %s242 = scalar_select %p241, %s13, 1
        %s243 = smul.addr %s242, 2
        %s244 = smul.addr %s243, 8
        %s245 = scalar_lea.vmem %s1, %s244
      $region44: #{decoder_block.1} parent=35 // pred_fallthru
        _
    $region36: #{decoder_block.1} parent=5 // pred_fallthru
      _
    %p246 = scmp.le.s32.totalorder 1, %s13
    %p247 = scmp.lt.s32.totalorder %s13, 3
    %p248 = pnand %p246, %p247
    %p249 = pneg %p248
    // Predicated region
    $region45: #{decoder_block.1} parent=5 // pred_check
      _
    $region46: #{decoder_block.1} parent=5 // pred_check_branch
      %251 = sbr.rel (%p248) target = $region48
    $region47: #{decoder_block.1} parent=5 // pred_region
      %s252 = ssub.s32 %s13, 1
      %p253 = scmp.lt.s32.totalorder %s18, 1
      %s254 = scalar_select %p253, %s18, 1
      %s255 = smul.addr %s254, 2
      %s256 = smul.addr %s255, 8
      %s257 = scalar_lea.vmem %s0, %s256
      %p258 = pneg %p39
      %p259 = pneg %p36
      %p260 = scmp.lt.s32.totalorder %s18, 1
      %s261 = scalar_select %p260, %s18, 1
      %s262 = smul.addr %s261, 2
      %s263 = smul.addr %s262, 8
      %s264 = scalar_lea.vmem %s1, %s263
      %p265 = pneg %p65
      %p266 = pneg %p62
      %p267 = pneg %p86
      %p268 = pneg %p83
      %p269 = pneg %p107
      %p270 = pneg %p104
      %p271 = pneg %p128
      %p272 = pneg %p125
      %p273 = pneg %p149
      %p274 = pneg %p146
      %p275 = pneg %p170
      %p276 = pneg %p167
      %p277 = pneg %p196
      %p278 = pneg %p193
      %p279 = scmp.lt.s32.totalorder %s18, 1
      %s280 = scalar_select %p279, %s18, 1
      %s281 = smul.addr %s280, 2
      %s282 = smul.addr %s281, 8
      %s283 = scalar_lea.vmem %s7, %s282
      %p284 = scmp.lt.s32.totalorder %s18, 1
      %s285 = scalar_select %p284, %s18, 1
      %s286 = smul.addr %s285, 2
      %s287 = smul.addr %s286, 8
      %s288 = scalar_lea.vmem %s0, %s287
      %p289 = scmp.lt.s32.totalorder %s18, 1
      %s290 = scalar_select %p289, %s18, 1
      %s291 = smul.addr %s290, 2
      %s292 = smul.addr %s291, 8
      %s293 = scalar_lea.vmem %s1, %s292
      %p294 = scmp.lt.s32.totalorder %s18, 1
      %s295 = scalar_select %p294, %s18, 1
      %s296 = smul.addr %s295, 2
      %s297 = smul.addr %s296, 8
      %s298 = scalar_lea.vmem %s7, %s297
      %vm299 = vcmask 261120
      %300 = vst.msk [vmem:[#allocation2] sm:$0xff] %vm299, 0.0
      %301 = vst.msk [vmem:[#allocation2 + $0x8] sm:$0xff] %vm299, 0.0
      %302 = vst.msk [vmem:[#allocation2 + $0x10] sm:$0xff] %vm299, 0.0
      %303 = vst.msk [vmem:[#allocation2 + $0x18] sm:$0xff] %vm299, 0.0
      %vm304 = vcmask 523264
      %305 = vst.msk [vmem:[#allocation4] sm:$0xff] %vm304, 0.0
      %306 = vst.msk [vmem:[#allocation4 + $0x8] sm:$0xff] %vm304, 0.0
      %307 = vst.msk [vmem:[#allocation4 + $0x10] sm:$0xff] %vm304, 0.0
      %308 = vst.msk [vmem:[#allocation4 + $0x18] sm:$0xff] %vm304, 0.0
      %309 = vst [vmem:[#allocation3] sm:$0xff] 0.0
      %310 = vst [vmem:[#allocation3 + $0x8] sm:$0xff] 0.0
      %311 = vst [vmem:[#allocation3 + $0x10] sm:$0xff] 0.0
      %312 = vst [vmem:[#allocation3 + $0x18] sm:$0xff] 0.0
      %v313 = vld [vmem:[%s288] sm:$0xff]
      %v314 = vld [vmem:[%s288 + $0x8] sm:$0xff]
      %315 = vst.msk [vmem:[#allocation2 + $0x8] sm:$0xff] %vm299, %v313
      %316 = vst.msk [vmem:[#allocation2 + $0x10] sm:$0xff] %vm299, %v314
      %v317 = vld [vmem:[%s293] sm:$0xff]
      %v318 = vld [vmem:[%s293 + $0x8] sm:$0xff]
      %319 = vst.msk [vmem:[#allocation4 + $0x8] sm:$0xff] %vm304, %v317
      %320 = vst.msk [vmem:[#allocation4 + $0x10] sm:$0xff] %vm304, %v318
      %v321 = vld [vmem:[#allocation2 + $0x7] sm:$0xff]
      %v322 = vld [vmem:[#allocation2 + $0xf] sm:$0xff]
      %v323 = vld [vmem:[%s2] sm:$0xff]
      %v324 = vld [vmem:[%s2 + $0x8] sm:$0xff]
      %v325 = vld [vmem:[%s2 + $0x10] sm:$0xff]
      %v326 = vld [vmem:[%s2 + $0x18] sm:$0xff]
      %v327 = vld [vmem:[#allocation2 + $0x8] sm:$0xff]
      %v328 = vld [vmem:[#allocation2 + $0x10] sm:$0xff]
      %s329 = scalar_lea.vmem %s2, 32
      %v330 = vld [vmem:[%s329] sm:$0xff]
      %v331 = vld [vmem:[%s329 + $0x8] sm:$0xff]
      %v332 = vld [vmem:[%s329 + $0x10] sm:$0xff]
      %v333 = vld [vmem:[%s329 + $0x18] sm:$0xff]
      %v335 = vsel %vm299, %v327, 0
      %v338 = vsel %vm299, %v328, 0
      %340 = vmatprep.subr.mxu0 0.0
      %341 = vmatpush1.msra.mxu0 %v330
      %342 = vmatprep.subr.mxu0 0.0
      %343 = vmatpush1.msra.mxu0 %v331
      %344 = vmatprep.subr.mxu0 0.0
      %345 = vmatpush1.msra.mxu0 %v332
      %346 = vmatprep.subr.mxu0 0.0
      %347 = vmatpush1.msra.mxu0 %v333
      %348 = vmatprep.subr.mxu0 0.0
      %349 = vmatpush1.msra.mxu0 0.0
      %350 = vmatprep.subr.mxu0 0.0
      %351 = vmatpush1.msra.mxu0 0.0
      %352 = vmatprep.subr.mxu0 0.0
      %353 = vmatpush1.msra.mxu0 0.0
      %354 = vmatprep.subr.mxu0 0.0
      %355 = vmatpush1.msra.mxu0 0.0
      %356 = vmatprep.subr.mxu0 0.0
      %357 = vmatpush1.msra.mxu0 0.0
      %358 = vmatprep.subr.mxu0 0.0
      %359 = vmatpush1.msra.mxu0 0.0
      %360 = vmatprep.subr.mxu0 0.0
      %361 = vmatpush1.msra.mxu0 0.0
      %362 = vmatprep.subr.mxu0 0.0
      %363 = vmatpush1.msra.mxu0 0.0
      %364 = vmatprep.subr.mxu0 0.0
      %365 = vmatpush1.msra.mxu0 0.0
      %366 = vmatprep.subr.mxu0 0.0
      %367 = vmatpush1.msra.mxu0 0.0
      %368 = vmatprep.subr.mxu0 0.0
      %369 = vmatpush1.msra.mxu0 0.0
      %370 = vmatprep.subr.mxu0 0.0
      %371 = vmatpush1.msra.mxu0 0.0
      %372 = vmatprep.subr.mxu0 0.0
      %373 = vmatpush1.msra.mxu0 0.0
      %374 = vmatprep.subr.mxu0 0.0
      %375 = vmatpush1.msra.mxu0 0.0
      %376 = vmatprep.subr.mxu0 0.0
      %377 = vmatpush1.msra.mxu0 0.0
      %378 = vmatprep.subr.mxu0 0.0
      %379 = vmatpush1.msra.mxu0 0.0
      %380 = vmatprep.subr.mxu0 0.0
      %381 = vmatpush1.msra.mxu0 0.0
      %382 = vmatprep.subr.mxu0 0.0
      %383 = vmatpush1.msra.mxu0 0.0
      %384 = vmatprep.subr.mxu0 0.0
      %385 = vmatpush1.msra.mxu0 0.0
      %386 = vmatprep.subr.mxu0 0.0
      %387 = vmatpush1.msra.mxu0 0.0
      %388 = vmatprep.subr.mxu0 0.0
      %389 = vmatpush1.msra.mxu0 0.0
      %390 = vmatprep.subr.mxu0 0.0
      %391 = vmatpush1.msra.mxu0 0.0
      %392 = vmatprep.subr.mxu0 0.0
      %393 = vmatpush1.msra.mxu0 0.0
      %394 = vmatprep.subr.mxu0 0.0
      %395 = vmatpush1.msra.mxu0 0.0
      %396 = vmatprep.subr.mxu0 0.0
      %397 = vmatpush1.msra.mxu0 0.0
      %398 = vmatprep.subr.mxu0 0.0
      %399 = vmatpush1.msra.mxu0 0.0
      %400 = vmatprep.subr.mxu0 0.0
      %401 = vmatpush1.msra.mxu0 0.0
      %402 = vmatprep.subr.mxu0 0.0
      %403 = vmatpush1.msra.mxu0 0.0
      %404 = vmatprep.mubr.f32.mxu0 0.0
      %405 = vmatmul.mubr.f32.gmra.mrb[0].mxu0 %v335
      %v406 = vpop.f32.mrb[0].mxu0
      %v407 = vadd.f32 0.0, %v406
      %v408 = vpop.f32.mrb[0].mxu0
      %409 = vmatprep.mubr.f32.mxu0 0.0
      %410 = vmatmul.mubr.f32.gmra.mrb[0].mxu0 %v338
      %v411 = vpop.f32.mrb[0].mxu0
      %v412 = vadd.f32 0.0, %v411
      %v413 = vpop.f32.mrb[0].mxu0
      %414 = vdwg.mxu0
      %v416 = vsel %vm299, %v321, 0
      %v419 = vsel %vm299, %v322, 0
      %421 = vmatprep.subr.mxu0 0.0
      %422 = vmatpush1.msra.mxu0 %v323
      %423 = vmatprep.subr.mxu0 0.0
      %424 = vmatpush1.msra.mxu0 %v324
      %425 = vmatprep.subr.mxu0 0.0
      %426 = vmatpush1.msra.mxu0 %v325
      %427 = vmatprep.subr.mxu0 0.0
      %428 = vmatpush1.msra.mxu0 %v326
      %429 = vmatprep.subr.mxu0 0.0
      %430 = vmatpush1.msra.mxu0 0.0
      %431 = vmatprep.subr.mxu0 0.0
      %432 = vmatpush1.msra.mxu0 0.0
      %433 = vmatprep.subr.mxu0 0.0
      %434 = vmatpush1.msra.mxu0 0.0
      %435 = vmatprep.subr.mxu0 0.0
      %436 = vmatpush1.msra.mxu0 0.0
      %437 = vmatprep.subr.mxu0 0.0
      %438 = vmatpush1.msra.mxu0 0.0
      %439 = vmatprep.subr.mxu0 0.0
      %440 = vmatpush1.msra.mxu0 0.0
      %441 = vmatprep.subr.mxu0 0.0
      %442 = vmatpush1.msra.mxu0 0.0
      %443 = vmatprep.subr.mxu0 0.0
      %444 = vmatpush1.msra.mxu0 0.0
      %445 = vmatprep.subr.mxu0 0.0
      %446 = vmatpush1.msra.mxu0 0.0
      %447 = vmatprep.subr.mxu0 0.0
      %448 = vmatpush1.msra.mxu0 0.0
      %449 = vmatprep.subr.mxu0 0.0
      %450 = vmatpush1.msra.mxu0 0.0
      %451 = vmatprep.subr.mxu0 0.0
      %452 = vmatpush1.msra.mxu0 0.0
      %453 = vmatprep.subr.mxu0 0.0
      %454 = vmatpush1.msra.mxu0 0.0
      %455 = vmatprep.subr.mxu0 0.0
      %456 = vmatpush1.msra.mxu0 0.0
      %457 = vmatprep.subr.mxu0 0.0
      %458 = vmatpush1.msra.mxu0 0.0
      %459 = vmatprep.subr.mxu0 0.0
      %460 = vmatpush1.msra.mxu0 0.0
      %461 = vmatprep.subr.mxu0 0.0
      %462 = vmatpush1.msra.mxu0 0.0
      %463 = vmatprep.subr.mxu0 0.0
      %464 = vmatpush1.msra.mxu0 0.0
      %465 = vmatprep.subr.mxu0 0.0
      %466 = vmatpush1.msra.mxu0 0.0
      %467 = vmatprep.subr.mxu0 0.0
      %468 = vmatpush1.msra.mxu0 0.0
      %469 = vmatprep.subr.mxu0 0.0
      %470 = vmatpush1.msra.mxu0 0.0
      %471 = vmatprep.subr.mxu0 0.0
      %472 = vmatpush1.msra.mxu0 0.0
      %473 = vmatprep.subr.mxu0 0.0
      %474 = vmatpush1.msra.mxu0 0.0
      %475 = vmatprep.subr.mxu0 0.0
      %476 = vmatpush1.msra.mxu0 0.0
      %477 = vmatprep.subr.mxu0 0.0
      %478 = vmatpush1.msra.mxu0 0.0
      %479 = vmatprep.subr.mxu0 0.0
      %480 = vmatpush1.msra.mxu0 0.0
      %481 = vmatprep.subr.mxu0 0.0
      %482 = vmatpush1.msra.mxu0 0.0
      %483 = vmatprep.subr.mxu0 0.0
      %484 = vmatpush1.msra.mxu0 0.0
      %485 = vmatprep.mubr.f32.mxu0 0.0
      %486 = vmatmul.mubr.f32.gmra.mrb[0].mxu0 %v416
      %v487 = vpop.f32.mrb[0].mxu0
      %v488 = vadd.f32 %v407, %v487
      %v489 = vpop.f32.mrb[0].mxu0
      %490 = vmatprep.mubr.f32.mxu0 0.0
      %491 = vmatmul.mubr.f32.gmra.mrb[0].mxu0 %v419
      %v492 = vpop.f32.mrb[0].mxu0
      %v493 = vadd.f32 %v412, %v492
      %v494 = vpop.f32.mrb[0].mxu0
      %495 = vdwg.mxu0
      %v496 = vld [vmem:[#allocation2 + $0x9] sm:$0xff]
      %v497 = vld [vmem:[#allocation2 + $0x11] sm:$0xff]
      %s498 = scalar_lea.vmem %s2, 64
      %v499 = vld [vmem:[%s498] sm:$0xff]
      %v500 = vld [vmem:[%s498 + $0x8] sm:$0xff]
      %v501 = vld [vmem:[%s498 + $0x10] sm:$0xff]
      %v502 = vld [vmem:[%s498 + $0x18] sm:$0xff]
      %v504 = vsel %vm299, %v496, 0
      %v507 = vsel %vm299, %v497, 0
      %509 = vmatprep.subr.mxu0 0.0
      %510 = vmatpush1.msra.mxu0 %v499
      %511 = vmatprep.subr.mxu0 0.0
      %512 = vmatpush1.msra.mxu0 %v500
      %513 = vmatprep.subr.mxu0 0.0
      %514 = vmatpush1.msra.mxu0 %v501
      %515 = vmatprep.subr.mxu0 0.0
      %516 = vmatpush1.msra.mxu0 %v502
      %517 = vmatprep.subr.mxu0 0.0
      %518 = vmatpush1.msra.mxu0 0.0
      %519 = vmatprep.subr.mxu0 0.0
      %520 = vmatpush1.msra.mxu0 0.0
      %521 = vmatprep.subr.mxu0 0.0
      %522 = vmatpush1.msra.mxu0 0.0
      %523 = vmatprep.subr.mxu0 0.0
      %524 = vmatpush1.msra.mxu0 0.0
      %525 = vmatprep.subr.mxu0 0.0
      %526 = vmatpush1.msra.mxu0 0.0
      %527 = vmatprep.subr.mxu0 0.0
      %528 = vmatpush1.msra.mxu0 0.0
      %529 = vmatprep.subr.mxu0 0.0
      %530 = vmatpush1.msra.mxu0 0.0
      %531 = vmatprep.subr.mxu0 0.0
      %532 = vmatpush1.msra.mxu0 0.0
      %533 = vmatprep.subr.mxu0 0.0
      %534 = vmatpush1.msra.mxu0 0.0
      %535 = vmatprep.subr.mxu0 0.0
      %536 = vmatpush1.msra.mxu0 0.0
      %537 = vmatprep.subr.mxu0 0.0
      %538 = vmatpush1.msra.mxu0 0.0
      %539 = vmatprep.subr.mxu0 0.0
      %540 = vmatpush1.msra.mxu0 0.0
      %541 = vmatprep.subr.mxu0 0.0
      %542 = vmatpush1.msra.mxu0 0.0
      %543 = vmatprep.subr.mxu0 0.0
      %544 = vmatpush1.msra.mxu0 0.0
      %545 = vmatprep.subr.mxu0 0.0
      %546 = vmatpush1.msra.mxu0 0.0
      %547 = vmatprep.subr.mxu0 0.0
      %548 = vmatpush1.msra.mxu0 0.0
      %549 = vmatprep.subr.mxu0 0.0
      %550 = vmatpush1.msra.mxu0 0.0
      %551 = vmatprep.subr.mxu0 0.0
      %552 = vmatpush1.msra.mxu0 0.0
      %553 = vmatprep.subr.mxu0 0.0
      %554 = vmatpush1.msra.mxu0 0.0
      %555 = vmatprep.subr.mxu0 0.0
      %556 = vmatpush1.msra.mxu0 0.0
      %557 = vmatprep.subr.mxu0 0.0
      %558 = vmatpush1.msra.mxu0 0.0
      %559 = vmatprep.subr.mxu0 0.0
      %560 = vmatpush1.msra.mxu0 0.0
      %561 = vmatprep.subr.mxu0 0.0
      %562 = vmatpush1.msra.mxu0 0.0
      %563 = vmatprep.subr.mxu0 0.0
      %564 = vmatpush1.msra.mxu0 0.0
      %565 = vmatprep.subr.mxu0 0.0
      %566 = vmatpush1.msra.mxu0 0.0
      %567 = vmatprep.subr.mxu0 0.0
      %568 = vmatpush1.msra.mxu0 0.0
      %569 = vmatprep.subr.mxu0 0.0
      %570 = vmatpush1.msra.mxu0 0.0
      %571 = vmatprep.subr.mxu0 0.0
      %572 = vmatpush1.msra.mxu0 0.0
      %573 = vmatprep.mubr.f32.mxu0 0.0
      %574 = vmatmul.mubr.f32.gmra.mrb[0].mxu0 %v504
      %v575 = vpop.f32.mrb[0].mxu0
      %v576 = vadd.f32 0.0, %v575
      %v577 = vpop.f32.mrb[0].mxu0
      %578 = vmatprep.mubr.f32.mxu0 0.0
      %579 = vmatmul.mubr.f32.gmra.mrb[0].mxu0 %v507
      %v580 = vpop.f32.mrb[0].mxu0
      %v581 = vadd.f32 0.0, %v580
      %v582 = vpop.f32.mrb[0].mxu0
      %583 = vdwg.mxu0
      %v584 = vadd.f32 %v488, %v576
      %v585 = vadd.f32 %v493, %v581
      %v586 = vld [vmem:[%s3] sm:$0x1]
      %v588 = vlaneseq
      %v589 = vshrl.u32 %v588, 7
      %v590 = vsub.s32 0, %v589
      %v591 = vrot.slane %v586, %v590
      %v593 = vadd.f32 %v584, %v591
      %v594 = vadd.f32 %v585, %v591
      %595 = vst [vmem:[#allocation3 + $0x8] sm:$0xff] %v593
      %596 = vst [vmem:[#allocation3 + $0x10] sm:$0xff] %v594
      %v597 = vld [vmem:[#allocation3 + $0x7] sm:$0xff]
      %v598 = vld [vmem:[#allocation3 + $0xf] sm:$0xff]
      %v599 = vld [vmem:[%s4] sm:$0xff]
      %v600 = vld [vmem:[%s4 + $0x8] sm:$0xff]
      %v601 = vld [vmem:[%s4 + $0x10] sm:$0xff]
      %v602 = vld [vmem:[%s4 + $0x18] sm:$0xff]
      %v603 = vld [vmem:[%s4 + $0x20] sm:$0xff]
      %v604 = vld [vmem:[%s4 + $0x28] sm:$0xff]
      %v605 = vld [vmem:[%s4 + $0x30] sm:$0xff]
      %v606 = vld [vmem:[%s4 + $0x38] sm:$0xff]
      %v607 = vld [vmem:[%s4 + $0x40] sm:$0xff]
      %v608 = vld [vmem:[%s4 + $0x48] sm:$0xff]
      %v609 = vld [vmem:[%s4 + $0x50] sm:$0xff]
      %v610 = vld [vmem:[%s4 + $0x58] sm:$0xff]
      %v611 = vld [vmem:[%s4 + $0x60] sm:$0xff]
      %v612 = vld [vmem:[%s4 + $0x68] sm:$0xff]
      %v613 = vld [vmem:[%s4 + $0x70] sm:$0xff]
      %v614 = vld [vmem:[%s4 + $0x78] sm:$0xff]
      %v615 = vld [vmem:[#allocation3 + $0x8] sm:$0xff]
      %v616 = vld [vmem:[#allocation3 + $0x10] sm:$0xff]
      %s617 = scalar_lea.vmem %s4, 128
      %v618 = vld [vmem:[%s617] sm:$0xff]
      %v619 = vld [vmem:[%s617 + $0x8] sm:$0xff]
      %v620 = vld [vmem:[%s617 + $0x10] sm:$0xff]
      %v621 = vld [vmem:[%s617 + $0x18] sm:$0xff]
      %v622 = vld [vmem:[%s617 + $0x20] sm:$0xff]
      %v623 = vld [vmem:[%s617 + $0x28] sm:$0xff]
      %v624 = vld [vmem:[%s617 + $0x30] sm:$0xff]
      %v625 = vld [vmem:[%s617 + $0x38] sm:$0xff]
      %v626 = vld [vmem:[%s617 + $0x40] sm:$0xff]
      %v627 = vld [vmem:[%s617 + $0x48] sm:$0xff]
      %v628 = vld [vmem:[%s617 + $0x50] sm:$0xff]
      %v629 = vld [vmem:[%s617 + $0x58] sm:$0xff]
      %v630 = vld [vmem:[%s617 + $0x60] sm:$0xff]
      %v631 = vld [vmem:[%s617 + $0x68] sm:$0xff]
      %v632 = vld [vmem:[%s617 + $0x70] sm:$0xff]
      %v633 = vld [vmem:[%s617 + $0x78] sm:$0xff]
      %634 = vmatprep.subr.mxu0 0.0
      %635 = vmatpush1.msra.mxu0 %v618
      %636 = vmatprep.subr.mxu0 0.0
      %637 = vmatpush1.msra.mxu0 %v619
      %638 = vmatprep.subr.mxu0 0.0
      %639 = vmatpush1.msra.mxu0 %v620
      %640 = vmatprep.subr.mxu0 0.0
      %641 = vmatpush1.msra.mxu0 %v621
      %642 = vmatprep.subr.mxu0 0.0
      %643 = vmatpush1.msra.mxu0 %v622
      %644 = vmatprep.subr.mxu0 0.0
      %645 = vmatpush1.msra.mxu0 %v623
      %646 = vmatprep.subr.mxu0 0.0
      %647 = vmatpush1.msra.mxu0 %v624
      %648 = vmatprep.subr.mxu0 0.0
      %649 = vmatpush1.msra.mxu0 %v625
      %650 = vmatprep.subr.mxu0 0.0
      %651 = vmatpush1.msra.mxu0 %v626
      %652 = vmatprep.subr.mxu0 0.0
      %653 = vmatpush1.msra.mxu0 %v627
      %654 = vmatprep.subr.mxu0 0.0
      %655 = vmatpush1.msra.mxu0 %v628
      %656 = vmatprep.subr.mxu0 0.0
      %657 = vmatpush1.msra.mxu0 %v629
      %658 = vmatprep.subr.mxu0 0.0
      %659 = vmatpush1.msra.mxu0 %v630
      %660 = vmatprep.subr.mxu0 0.0
      %661 = vmatpush1.msra.mxu0 %v631
      %662 = vmatprep.subr.mxu0 0.0
      %663 = vmatpush1.msra.mxu0 %v632
      %664 = vmatprep.subr.mxu0 0.0
      %665 = vmatpush1.msra.mxu0 %v633
      %666 = vmatprep.subr.mxu0 0.0
      %667 = vmatpush1.msra.mxu0 0.0
      %668 = vmatprep.subr.mxu0 0.0
      %669 = vmatpush1.msra.mxu0 0.0
      %670 = vmatprep.subr.mxu0 0.0
      %671 = vmatpush1.msra.mxu0 0.0
      %672 = vmatprep.subr.mxu0 0.0
      %673 = vmatpush1.msra.mxu0 0.0
      %674 = vmatprep.subr.mxu0 0.0
      %675 = vmatpush1.msra.mxu0 0.0
      %676 = vmatprep.subr.mxu0 0.0
      %677 = vmatpush1.msra.mxu0 0.0
      %678 = vmatprep.subr.mxu0 0.0
      %679 = vmatpush1.msra.mxu0 0.0
      %680 = vmatprep.subr.mxu0 0.0
      %681 = vmatpush1.msra.mxu0 0.0
      %682 = vmatprep.subr.mxu0 0.0
      %683 = vmatpush1.msra.mxu0 0.0
      %684 = vmatprep.subr.mxu0 0.0
      %685 = vmatpush1.msra.mxu0 0.0
      %686 = vmatprep.subr.mxu0 0.0
      %687 = vmatpush1.msra.mxu0 0.0
      %688 = vmatprep.subr.mxu0 0.0
      %689 = vmatpush1.msra.mxu0 0.0
      %690 = vmatprep.subr.mxu0 0.0
      %691 = vmatpush1.msra.mxu0 0.0
      %692 = vmatprep.subr.mxu0 0.0
      %693 = vmatpush1.msra.mxu0 0.0
      %694 = vmatprep.subr.mxu0 0.0
      %695 = vmatpush1.msra.mxu0 0.0
      %696 = vmatprep.subr.mxu0 0.0
      %697 = vmatpush1.msra.mxu0 0.0
      %698 = vmatprep.mubr.f32.mxu0 0.0
      %699 = vmatmul.mubr.f32.gmra.mrb[0].mxu0 %v615
      %v700 = vpop.f32.mrb[0].mxu0
      %v701 = vadd.f32 0.0, %v700
      %v702 = vpop.f32.mrb[0].mxu0
      %703 = vmatprep.mubr.f32.mxu0 0.0
      %704 = vmatmul.mubr.f32.gmra.mrb[0].mxu0 %v616
      %v705 = vpop.f32.mrb[0].mxu0
      %v706 = vadd.f32 0.0, %v705
      %v707 = vpop.f32.mrb[0].mxu0
      %708 = vdwg.mxu0
      %709 = vmatprep.subr.mxu0 0.0
      %710 = vmatpush1.msra.mxu0 %v599
      %711 = vmatprep.subr.mxu0 0.0
      %712 = vmatpush1.msra.mxu0 %v600
      %713 = vmatprep.subr.mxu0 0.0
      %714 = vmatpush1.msra.mxu0 %v601
      %715 = vmatprep.subr.mxu0 0.0
      %716 = vmatpush1.msra.mxu0 %v602
      %717 = vmatprep.subr.mxu0 0.0
      %718 = vmatpush1.msra.mxu0 %v603
      %719 = vmatprep.subr.mxu0 0.0
      %720 = vmatpush1.msra.mxu0 %v604
      %721 = vmatprep.subr.mxu0 0.0
      %722 = vmatpush1.msra.mxu0 %v605
      %723 = vmatprep.subr.mxu0 0.0
      %724 = vmatpush1.msra.mxu0 %v606
      %725 = vmatprep.subr.mxu0 0.0
      %726 = vmatpush1.msra.mxu0 %v607
      %727 = vmatprep.subr.mxu0 0.0
      %728 = vmatpush1.msra.mxu0 %v608
      %729 = vmatprep.subr.mxu0 0.0
      %730 = vmatpush1.msra.mxu0 %v609
      %731 = vmatprep.subr.mxu0 0.0
      %732 = vmatpush1.msra.mxu0 %v610
      %733 = vmatprep.subr.mxu0 0.0
      %734 = vmatpush1.msra.mxu0 %v611
      %735 = vmatprep.subr.mxu0 0.0
      %736 = vmatpush1.msra.mxu0 %v612
      %737 = vmatprep.subr.mxu0 0.0
      %738 = vmatpush1.msra.mxu0 %v613
      %739 = vmatprep.subr.mxu0 0.0
      %740 = vmatpush1.msra.mxu0 %v614
      %741 = vmatprep.subr.mxu0 0.0
      %742 = vmatpush1.msra.mxu0 0.0
      %743 = vmatprep.subr.mxu0 0.0
      %744 = vmatpush1.msra.mxu0 0.0
      %745 = vmatprep.subr.mxu0 0.0
      %746 = vmatpush1.msra.mxu0 0.0
      %747 = vmatprep.subr.mxu0 0.0
      %748 = vmatpush1.msra.mxu0 0.0
      %749 = vmatprep.subr.mxu0 0.0
      %750 = vmatpush1.msra.mxu0 0.0
      %751 = vmatprep.subr.mxu0 0.0
      %752 = vmatpush1.msra.mxu0 0.0
      %753 = vmatprep.subr.mxu0 0.0
      %754 = vmatpush1.msra.mxu0 0.0
      %755 = vmatprep.subr.mxu0 0.0
      %756 = vmatpush1.msra.mxu0 0.0
      %757 = vmatprep.subr.mxu0 0.0
      %758 = vmatpush1.msra.mxu0 0.0
      %759 = vmatprep.subr.mxu0 0.0
      %760 = vmatpush1.msra.mxu0 0.0
      %761 = vmatprep.subr.mxu0 0.0
      %762 = vmatpush1.msra.mxu0 0.0
      %763 = vmatprep.subr.mxu0 0.0
      %764 = vmatpush1.msra.mxu0 0.0
      %765 = vmatprep.subr.mxu0 0.0
      %766 = vmatpush1.msra.mxu0 0.0
      %767 = vmatprep.subr.mxu0 0.0
      %768 = vmatpush1.msra.mxu0 0.0
      %769 = vmatprep.subr.mxu0 0.0
      %770 = vmatpush1.msra.mxu0 0.0
      %771 = vmatprep.subr.mxu0 0.0
      %772 = vmatpush1.msra.mxu0 0.0
      %773 = vmatprep.mubr.f32.mxu0 0.0
      %774 = vmatmul.mubr.f32.gmra.mrb[0].mxu0 %v597
      %v775 = vpop.f32.mrb[0].mxu0
      %v776 = vadd.f32 %v701, %v775
      %v777 = vpop.f32.mrb[0].mxu0
      %778 = vmatprep.mubr.f32.mxu0 0.0
      %779 = vmatmul.mubr.f32.gmra.mrb[0].mxu0 %v598
      %v780 = vpop.f32.mrb[0].mxu0
      %v781 = vadd.f32 %v706, %v780
      %v782 = vpop.f32.mrb[0].mxu0
      %783 = vdwg.mxu0
      %v784 = vld [vmem:[#allocation3 + $0x9] sm:$0xff]
      %v785 = vld [vmem:[#allocation3 + $0x11] sm:$0xff]
      %s786 = scalar_lea.vmem %s4, 256
      %v787 = vld [vmem:[%s786] sm:$0xff]
      %v788 = vld [vmem:[%s786 + $0x8] sm:$0xff]
      %v789 = vld [vmem:[%s786 + $0x10] sm:$0xff]
      %v790 = vld [vmem:[%s786 + $0x18] sm:$0xff]
      %v791 = vld [vmem:[%s786 + $0x20] sm:$0xff]
      %v792 = vld [vmem:[%s786 + $0x28] sm:$0xff]
      %v793 = vld [vmem:[%s786 + $0x30] sm:$0xff]
      %v794 = vld [vmem:[%s786 + $0x38] sm:$0xff]
      %v795 = vld [vmem:[%s786 + $0x40] sm:$0xff]
      %v796 = vld [vmem:[%s786 + $0x48] sm:$0xff]
      %v797 = vld [vmem:[%s786 + $0x50] sm:$0xff]
      %v798 = vld [vmem:[%s786 + $0x58] sm:$0xff]
      %v799 = vld [vmem:[%s786 + $0x60] sm:$0xff]
      %v800 = vld [vmem:[%s786 + $0x68] sm:$0xff]
      %v801 = vld [vmem:[%s786 + $0x70] sm:$0xff]
      %v802 = vld [vmem:[%s786 + $0x78] sm:$0xff]
      %803 = vmatprep.subr.mxu0 0.0
      %804 = vmatpush1.msra.mxu0 %v787
      %805 = vmatprep.subr.mxu0 0.0
      %806 = vmatpush1.msra.mxu0 %v788
      %807 = vmatprep.subr.mxu0 0.0
      %808 = vmatpush1.msra.mxu0 %v789
      %809 = vmatprep.subr.mxu0 0.0
      %810 = vmatpush1.msra.mxu0 %v790
      %811 = vmatprep.subr.mxu0 0.0
      %812 = vmatpush1.msra.mxu0 %v791
      %813 = vmatprep.subr.mxu0 0.0
      %814 = vmatpush1.msra.mxu0 %v792
      %815 = vmatprep.subr.mxu0 0.0
      %816 = vmatpush1.msra.mxu0 %v793
      %817 = vmatprep.subr.mxu0 0.0
      %818 = vmatpush1.msra.mxu0 %v794
      %819 = vmatprep.subr.mxu0 0.0
      %820 = vmatpush1.msra.mxu0 %v795
      %821 = vmatprep.subr.mxu0 0.0
      %822 = vmatpush1.msra.mxu0 %v796
      %823 = vmatprep.subr.mxu0 0.0
      %824 = vmatpush1.msra.mxu0 %v797
      %825 = vmatprep.subr.mxu0 0.0
      %826 = vmatpush1.msra.mxu0 %v798
      %827 = vmatprep.subr.mxu0 0.0
      %828 = vmatpush1.msra.mxu0 %v799
      %829 = vmatprep.subr.mxu0 0.0
      %830 = vmatpush1.msra.mxu0 %v800
      %831 = vmatprep.subr.mxu0 0.0
      %832 = vmatpush1.msra.mxu0 %v801
      %833 = vmatprep.subr.mxu0 0.0
      %834 = vmatpush1.msra.mxu0 %v802
      %835 = vmatprep.subr.mxu0 0.0
      %836 = vmatpush1.msra.mxu0 0.0
      %837 = vmatprep.subr.mxu0 0.0
      %838 = vmatpush1.msra.mxu0 0.0
      %839 = vmatprep.subr.mxu0 0.0
      %840 = vmatpush1.msra.mxu0 0.0
      %841 = vmatprep.subr.mxu0 0.0
      %842 = vmatpush1.msra.mxu0 0.0
      %843 = vmatprep.subr.mxu0 0.0
      %844 = vmatpush1.msra.mxu0 0.0
      %845 = vmatprep.subr.mxu0 0.0
      %846 = vmatpush1.msra.mxu0 0.0
      %847 = vmatprep.subr.mxu0 0.0
      %848 = vmatpush1.msra.mxu0 0.0
      %849 = vmatprep.subr.mxu0 0.0
      %850 = vmatpush1.msra.mxu0 0.0
      %851 = vmatprep.subr.mxu0 0.0
      %852 = vmatpush1.msra.mxu0 0.0
      %853 = vmatprep.subr.mxu0 0.0
      %854 = vmatpush1.msra.mxu0 0.0
      %855 = vmatprep.subr.mxu0 0.0
      %856 = vmatpush1.msra.mxu0 0.0
      %857 = vmatprep.subr.mxu0 0.0
      %858 = vmatpush1.msra.mxu0 0.0
      %859 = vmatprep.subr.mxu0 0.0
      %860 = vmatpush1.msra.mxu0 0.0
      %861 = vmatprep.subr.mxu0 0.0
      %862 = vmatpush1.msra.mxu0 0.0
      %863 = vmatprep.subr.mxu0 0.0
      %864 = vmatpush1.msra.mxu0 0.0
      %865 = vmatprep.subr.mxu0 0.0
      %866 = vmatpush1.msra.mxu0 0.0
      %867 = vmatprep.mubr.f32.mxu0 0.0
      %868 = vmatmul.mubr.f32.gmra.mrb[0].mxu0 %v784
      %v869 = vpop.f32.mrb[0].mxu0
      %v870 = vadd.f32 0.0, %v869
      %v871 = vpop.f32.mrb[0].mxu0
      %872 = vmatprep.mubr.f32.mxu0 0.0
      %873 = vmatmul.mubr.f32.gmra.mrb[0].mxu0 %v785
      %v874 = vpop.f32.mrb[0].mxu0
      %v875 = vadd.f32 0.0, %v874
      %v876 = vpop.f32.mrb[0].mxu0
      %877 = vdwg.mxu0
      %v878 = vadd.f32 %v776, %v870
      %v879 = vadd.f32 %v781, %v875
      %v880 = vld [vmem:[#allocation4 + $0x7] sm:$0xff]
      %v881 = vld [vmem:[#allocation4 + $0xf] sm:$0xff]
      %v882 = vld [vmem:[%s5] sm:$0xff]
      %v883 = vld [vmem:[%s5 + $0x8] sm:$0xff]
      %v884 = vld [vmem:[%s5 + $0x10] sm:$0xff]
      %v885 = vld [vmem:[%s5 + $0x18] sm:$0xff]
      %v886 = vld [vmem:[%s5 + $0x20] sm:$0xff]
      %v887 = vld [vmem:[%s5 + $0x28] sm:$0xff]
      %v888 = vld [vmem:[%s5 + $0x30] sm:$0xff]
      %v889 = vld [vmem:[%s5 + $0x38] sm:$0xff]
      %v890 = vld [vmem:[#allocation4 + $0x8] sm:$0xff]
      %v891 = vld [vmem:[#allocation4 + $0x10] sm:$0xff]
      %s892 = scalar_lea.vmem %s5, 64
      %v893 = vld [vmem:[%s892] sm:$0xff]
      %v894 = vld [vmem:[%s892 + $0x8] sm:$0xff]
      %v895 = vld [vmem:[%s892 + $0x10] sm:$0xff]
      %v896 = vld [vmem:[%s892 + $0x18] sm:$0xff]
      %v897 = vld [vmem:[%s892 + $0x20] sm:$0xff]
      %v898 = vld [vmem:[%s892 + $0x28] sm:$0xff]
      %v899 = vld [vmem:[%s892 + $0x30] sm:$0xff]
      %v900 = vld [vmem:[%s892 + $0x38] sm:$0xff]
      %v902 = vsel %vm304, %v890, 0
      %v905 = vsel %vm304, %v891, 0
      %907 = vmatprep.subr.mxu0 0.0
      %908 = vmatpush1.msra.mxu0 %v893
      %909 = vmatprep.subr.mxu0 0.0
      %910 = vmatpush1.msra.mxu0 %v894
      %911 = vmatprep.subr.mxu0 0.0
      %912 = vmatpush1.msra.mxu0 %v895
      %913 = vmatprep.subr.mxu0 0.0
      %914 = vmatpush1.msra.mxu0 %v896
      %915 = vmatprep.subr.mxu0 0.0
      %916 = vmatpush1.msra.mxu0 %v897
      %917 = vmatprep.subr.mxu0 0.0
      %918 = vmatpush1.msra.mxu0 %v898
      %919 = vmatprep.subr.mxu0 0.0
      %920 = vmatpush1.msra.mxu0 %v899
      %921 = vmatprep.subr.mxu0 0.0
      %922 = vmatpush1.msra.mxu0 %v900
      %923 = vmatprep.subr.mxu0 0.0
      %924 = vmatpush1.msra.mxu0 0.0
      %925 = vmatprep.subr.mxu0 0.0
      %926 = vmatpush1.msra.mxu0 0.0
      %927 = vmatprep.subr.mxu0 0.0
      %928 = vmatpush1.msra.mxu0 0.0
      %929 = vmatprep.subr.mxu0 0.0
      %930 = vmatpush1.msra.mxu0 0.0
      %931 = vmatprep.subr.mxu0 0.0
      %932 = vmatpush1.msra.mxu0 0.0
      %933 = vmatprep.subr.mxu0 0.0
      %934 = vmatpush1.msra.mxu0 0.0
      %935 = vmatprep.subr.mxu0 0.0
      %936 = vmatpush1.msra.mxu0 0.0
      %937 = vmatprep.subr.mxu0 0.0
      %938 = vmatpush1.msra.mxu0 0.0
      %939 = vmatprep.subr.mxu0 0.0
      %940 = vmatpush1.msra.mxu0 0.0
      %941 = vmatprep.subr.mxu0 0.0
      %942 = vmatpush1.msra.mxu0 0.0
      %943 = vmatprep.subr.mxu0 0.0
      %944 = vmatpush1.msra.mxu0 0.0
      %945 = vmatprep.subr.mxu0 0.0
      %946 = vmatpush1.msra.mxu0 0.0
      %947 = vmatprep.subr.mxu0 0.0
      %948 = vmatpush1.msra.mxu0 0.0
      %949 = vmatprep.subr.mxu0 0.0
      %950 = vmatpush1.msra.mxu0 0.0
      %951 = vmatprep.subr.mxu0 0.0
      %952 = vmatpush1.msra.mxu0 0.0
      %953 = vmatprep.subr.mxu0 0.0
      %954 = vmatpush1.msra.mxu0 0.0
      %955 = vmatprep.subr.mxu0 0.0
      %956 = vmatpush1.msra.mxu0 0.0
      %957 = vmatprep.subr.mxu0 0.0
      %958 = vmatpush1.msra.mxu0 0.0
      %959 = vmatprep.subr.mxu0 0.0
      %960 = vmatpush1.msra.mxu0 0.0
      %961 = vmatprep.subr.mxu0 0.0
      %962 = vmatpush1.msra.mxu0 0.0
      %963 = vmatprep.subr.mxu0 0.0
      %964 = vmatpush1.msra.mxu0 0.0
      %965 = vmatprep.subr.mxu0 0.0
      %966 = vmatpush1.msra.mxu0 0.0
      %967 = vmatprep.subr.mxu0 0.0
      %968 = vmatpush1.msra.mxu0 0.0
      %969 = vmatprep.subr.mxu0 0.0
      %970 = vmatpush1.msra.mxu0 0.0
      %971 = vmatprep.mubr.f32.mxu0 0.0
      %972 = vmatmul.mubr.f32.gmra.mrb[0].mxu0 %v902
      %v973 = vpop.f32.mrb[0].mxu0
      %v974 = vadd.f32 0.0, %v973
      %v975 = vpop.f32.mrb[0].mxu0
      %976 = vmatprep.mubr.f32.mxu0 0.0
      %977 = vmatmul.mubr.f32.gmra.mrb[0].mxu0 %v905
      %v978 = vpop.f32.mrb[0].mxu0
      %v979 = vadd.f32 0.0, %v978
      %v980 = vpop.f32.mrb[0].mxu0
      %981 = vdwg.mxu0
      %v983 = vsel %vm304, %v880, 0
      %v986 = vsel %vm304, %v881, 0
      %988 = vmatprep.subr.mxu0 0.0
      %989 = vmatpush1.msra.mxu0 %v882
      %990 = vmatprep.subr.mxu0 0.0
      %991 = vmatpush1.msra.mxu0 %v883
      %992 = vmatprep.subr.mxu0 0.0
      %993 = vmatpush1.msra.mxu0 %v884
      %994 = vmatprep.subr.mxu0 0.0
      %995 = vmatpush1.msra.mxu0 %v885
      %996 = vmatprep.subr.mxu0 0.0
      %997 = vmatpush1.msra.mxu0 %v886
      %998 = vmatprep.subr.mxu0 0.0
      %999 = vmatpush1.msra.mxu0 %v887
      %1000 = vmatprep.subr.mxu0 0.0
      %1001 = vmatpush1.msra.mxu0 %v888
      %1002 = vmatprep.subr.mxu0 0.0
      %1003 = vmatpush1.msra.mxu0 %v889
      %1004 = vmatprep.subr.mxu0 0.0
      %1005 = vmatpush1.msra.mxu0 0.0
      %1006 = vmatprep.subr.mxu0 0.0
      %1007 = vmatpush1.msra.mxu0 0.0
      %1008 = vmatprep.subr.mxu0 0.0
      %1009 = vmatpush1.msra.mxu0 0.0
      %1010 = vmatprep.subr.mxu0 0.0
      %1011 = vmatpush1.msra.mxu0 0.0
      %1012 = vmatprep.subr.mxu0 0.0
      %1013 = vmatpush1.msra.mxu0 0.0
      %1014 = vmatprep.subr.mxu0 0.0
      %1015 = vmatpush1.msra.mxu0 0.0
      %1016 = vmatprep.subr.mxu0 0.0
      %1017 = vmatpush1.msra.mxu0 0.0
      %1018 = vmatprep.subr.mxu0 0.0
      %1019 = vmatpush1.msra.mxu0 0.0
      %1020 = vmatprep.subr.mxu0 0.0
      %1021 = vmatpush1.msra.mxu0 0.0
      %1022 = vmatprep.subr.mxu0 0.0
      %1023 = vmatpush1.msra.mxu0 0.0
      %1024 = vmatprep.subr.mxu0 0.0
      %1025 = vmatpush1.msra.mxu0 0.0
      %1026 = vmatprep.subr.mxu0 0.0
      %1027 = vmatpush1.msra.mxu0 0.0
      %1028 = vmatprep.subr.mxu0 0.0
      %1029 = vmatpush1.msra.mxu0 0.0
      %1030 = vmatprep.subr.mxu0 0.0
      %1031 = vmatpush1.msra.mxu0 0.0
      %1032 = vmatprep.subr.mxu0 0.0
      %1033 = vmatpush1.msra.mxu0 0.0
      %1034 = vmatprep.subr.mxu0 0.0
      %1035 = vmatpush1.msra.mxu0 0.0
      %1036 = vmatprep.subr.mxu0 0.0
      %1037 = vmatpush1.msra.mxu0 0.0
      %1038 = vmatprep.subr.mxu0 0.0
      %1039 = vmatpush1.msra.mxu0 0.0
      %1040 = vmatprep.subr.mxu0 0.0
      %1041 = vmatpush1.msra.mxu0 0.0
      %1042 = vmatprep.subr.mxu0 0.0
      %1043 = vmatpush1.msra.mxu0 0.0
      %1044 = vmatprep.subr.mxu0 0.0
      %1045 = vmatpush1.msra.mxu0 0.0
      %1046 = vmatprep.subr.mxu0 0.0
      %1047 = vmatpush1.msra.mxu0 0.0
      %1048 = vmatprep.subr.mxu0 0.0
      %1049 = vmatpush1.msra.mxu0 0.0
      %1050 = vmatprep.subr.mxu0 0.0
      %1051 = vmatpush1.msra.mxu0 0.0
      %1052 = vmatprep.mubr.f32.mxu0 0.0
      %1053 = vmatmul.mubr.f32.gmra.mrb[0].mxu0 %v983
      %v1054 = vpop.f32.mrb[0].mxu0
      %v1055 = vadd.f32 %v974, %v1054
      %v1056 = vpop.f32.mrb[0].mxu0
      %1057 = vmatprep.mubr.f32.mxu0 0.0
      %1058 = vmatmul.mubr.f32.gmra.mrb[0].mxu0 %v986
      %v1059 = vpop.f32.mrb[0].mxu0
      %v1060 = vadd.f32 %v979, %v1059
      %v1061 = vpop.f32.mrb[0].mxu0
      %1062 = vdwg.mxu0
      %v1063 = vld [vmem:[#allocation4 + $0x9] sm:$0xff]
      %v1064 = vld [vmem:[#allocation4 + $0x11] sm:$0xff]
      %s1065 = scalar_lea.vmem %s5, 128
      %v1066 = vld [vmem:[%s1065] sm:$0xff]
      %v1067 = vld [vmem:[%s1065 + $0x8] sm:$0xff]
      %v1068 = vld [vmem:[%s1065 + $0x10] sm:$0xff]
      %v1069 = vld [vmem:[%s1065 + $0x18] sm:$0xff]
      %v1070 = vld [vmem:[%s1065 + $0x20] sm:$0xff]
      %v1071 = vld [vmem:[%s1065 + $0x28] sm:$0xff]
      %v1072 = vld [vmem:[%s1065 + $0x30] sm:$0xff]
      %v1073 = vld [vmem:[%s1065 + $0x38] sm:$0xff]
      %v1075 = vsel %vm304, %v1063, 0
      %v1078 = vsel %vm304, %v1064, 0
      %1080 = vmatprep.subr.mxu0 0.0
      %1081 = vmatpush1.msra.mxu0 %v1066
      %1082 = vmatprep.subr.mxu0 0.0
      %1083 = vmatpush1.msra.mxu0 %v1067
      %1084 = vmatprep.subr.mxu0 0.0
      %1085 = vmatpush1.msra.mxu0 %v1068
      %1086 = vmatprep.subr.mxu0 0.0
      %1087 = vmatpush1.msra.mxu0 %v1069
      %1088 = vmatprep.subr.mxu0 0.0
      %1089 = vmatpush1.msra.mxu0 %v1070
      %1090 = vmatprep.subr.mxu0 0.0
      %1091 = vmatpush1.msra.mxu0 %v1071
      %1092 = vmatprep.subr.mxu0 0.0
      %1093 = vmatpush1.msra.mxu0 %v1072
      %1094 = vmatprep.subr.mxu0 0.0
      %1095 = vmatpush1.msra.mxu0 %v1073
      %1096 = vmatprep.subr.mxu0 0.0
      %1097 = vmatpush1.msra.mxu0 0.0
      %1098 = vmatprep.subr.mxu0 0.0
      %1099 = vmatpush1.msra.mxu0 0.0
      %1100 = vmatprep.subr.mxu0 0.0
      %1101 = vmatpush1.msra.mxu0 0.0
      %1102 = vmatprep.subr.mxu0 0.0
      %1103 = vmatpush1.msra.mxu0 0.0
      %1104 = vmatprep.subr.mxu0 0.0
      %1105 = vmatpush1.msra.mxu0 0.0
      %1106 = vmatprep.subr.mxu0 0.0
      %1107 = vmatpush1.msra.mxu0 0.0
      %1108 = vmatprep.subr.mxu0 0.0
      %1109 = vmatpush1.msra.mxu0 0.0
      %1110 = vmatprep.subr.mxu0 0.0
      %1111 = vmatpush1.msra.mxu0 0.0
      %1112 = vmatprep.subr.mxu0 0.0
      %1113 = vmatpush1.msra.mxu0 0.0
      %1114 = vmatprep.subr.mxu0 0.0
      %1115 = vmatpush1.msra.mxu0 0.0
      %1116 = vmatprep.subr.mxu0 0.0
      %1117 = vmatpush1.msra.mxu0 0.0
      %1118 = vmatprep.subr.mxu0 0.0
      %1119 = vmatpush1.msra.mxu0 0.0
      %1120 = vmatprep.subr.mxu0 0.0
      %1121 = vmatpush1.msra.mxu0 0.0
      %1122 = vmatprep.subr.mxu0 0.0
      %1123 = vmatpush1.msra.mxu0 0.0
      %1124 = vmatprep.subr.mxu0 0.0
      %1125 = vmatpush1.msra.mxu0 0.0
      %1126 = vmatprep.subr.mxu0 0.0
      %1127 = vmatpush1.msra.mxu0 0.0
      %1128 = vmatprep.subr.mxu0 0.0
      %1129 = vmatpush1.msra.mxu0 0.0
      %1130 = vmatprep.subr.mxu0 0.0
      %1131 = vmatpush1.msra.mxu0 0.0
      %1132 = vmatprep.subr.mxu0 0.0
      %1133 = vmatpush1.msra.mxu0 0.0
      %1134 = vmatprep.subr.mxu0 0.0
      %1135 = vmatpush1.msra.mxu0 0.0
      %1136 = vmatprep.subr.mxu0 0.0
      %1137 = vmatpush1.msra.mxu0 0.0
      %1138 = vmatprep.subr.mxu0 0.0
      %1139 = vmatpush1.msra.mxu0 0.0
      %1140 = vmatprep.subr.mxu0 0.0
      %1141 = vmatpush1.msra.mxu0 0.0
      %1142 = vmatprep.subr.mxu0 0.0
      %1143 = vmatpush1.msra.mxu0 0.0
      %1144 = vmatprep.mubr.f32.mxu0 0.0
      %1145 = vmatmul.mubr.f32.gmra.mrb[0].mxu0 %v1075
      %v1146 = vpop.f32.mrb[0].mxu0
      %v1147 = vadd.f32 0.0, %v1146
      %v1148 = vpop.f32.mrb[0].mxu0
      %1149 = vmatprep.mubr.f32.mxu0 0.0
      %1150 = vmatmul.mubr.f32.gmra.mrb[0].mxu0 %v1078
      %v1151 = vpop.f32.mrb[0].mxu0
      %v1152 = vadd.f32 0.0, %v1151
      %v1153 = vpop.f32.mrb[0].mxu0
      %1154 = vdwg.mxu0
      %v1155 = vadd.f32 %v1055, %v1147
      %v1156 = vadd.f32 %v1060, %v1152
      %v1157 = vadd.f32 %v878, %v1155
      %v1158 = vadd.f32 %v879, %v1156
      %v1159 = vld [vmem:[%s6] sm:$0x1]
      %v1161 = vlaneseq
      %v1162 = vshrl.u32 %v1161, 7
      %v1163 = vsub.s32 0, %v1162
      %v1164 = vrot.slane %v1159, %v1163
      %v1166 = vadd.f32 %v1157, %v1164
      %v1167 = vadd.f32 %v1158, %v1164
      %v1168 = vmax.f32 %v1166, 0.0
      %v1169 = vmax.f32 %v1167, 0.0
      %1170 = vst [vmem:[%s298] sm:$0xff] %v1168
      %1171 = vst [vmem:[%s298 + $0x8] sm:$0xff] %v1169
      %p1172 = scmp.lt.s32.totalorder %s18, 1
      %s1173 = scalar_select %p1172, %s18, 1
      %s1174 = smul.addr %s1173, 2
      %s1175 = smul.addr %s1174, 8
      %s1176 = scalar_lea.vmem %s7, %s1175
      // Predicated region
      $region49: #{decoder_block.1} parent=47 // pred_check
        %p1177 = pneg %p193
      $region50: #{decoder_block.1} parent=47 // pred_check_branch
        %1179 = sbr.rel (%p1177) target = $region52
      $region51: #{decoder_block.1} parent=47 // pred_region
        _
      $region52: #{decoder_block.1} parent=47 // pred_fallthru
        _
    $region48: #{decoder_block.1} parent=5 // pred_fallthru
      _
    %p1180 = scmp.le.s32.totalorder 2, %s13
    // Predicated region
    $region53: #{decoder_block.1} parent=5 // pred_check
      %p1181 = pneg %p1180
    $region54: #{decoder_block.1} parent=5 // pred_check_branch
      %1183 = sbr.rel (%p1181) target = $region56
    $region55: #{decoder_block.1} parent=5 // pred_region
      %s1184 = ssub.s32 %s13, 2
      // Predicated region
      $region57: #{decoder_block.1} parent=55 // pred_check
        %p1185 = pneg %p199
      $region58: #{decoder_block.1} parent=55 // pred_check_branch
        %1187 = sbr.rel (%p1185) target = $region60
      $region59: #{decoder_block.1} parent=55 // pred_region
        %p1188 = scmp.lt.s32.totalorder %s19, 1
        %s1189 = scalar_select %p1188, %s19, 1
        %s1190 = smul.addr %s1189, 2
        %s1191 = smul.addr %s1190, 8
        %s1192 = scalar_lea.vmem %s7, %s1191
      $region60: #{decoder_block.1} parent=55 // pred_fallthru
        _
    $region56: #{decoder_block.1} parent=5 // pred_fallthru
      _
  $region6: #{decoder_block.1} parent=0 // loop_footer
    %s17 = sadd.s32 1, %s13
  $region7: #{decoder_block.1} parent=0 // loop_footer_branch
    %12 = sbr.rel target = $region3
  $region8: #{decoder_block.1} parent=0 // loop_exit
    _

</llo_original>
